<compile_context>
chip_gen: v7x
topology: tpu7x:2x2x1
jax: 0.10.0
libtpu: 0.0.40
codegen_flags: <defaults>
</compile_context>

<pallas_src>
import functools

import jax
import jax.numpy as jnp
from jax import lax
from jax.experimental import pallas as pl
from jax.experimental.pallas import tpu as pltpu


def _static_int_pow(x, n: int):
    """x**n for a static non-negative Python int n, via square-and-multiply."""
    if n == 0:
        return jnp.ones_like(x)
    result = None
    base = x
    m = n
    while m > 0:
        if m & 1:
            result = base if result is None else result * base
        m >>= 1
        if m:
            base = base * base
    return result


def _apply_power(k, order):
    """k**order with cheap paths for static integer / half-integer orders."""
    if isinstance(order, int) or (isinstance(order, float) and float(order).is_integer()):
        n = int(order)
        if n >= 0:
            return _static_int_pow(k, n)
        return 1.0 / _static_int_pow(k, -n)
    if isinstance(order, float) and float(2 * order).is_integer() and order > 0:
        # k**(n + 0.5) = k**n * sqrt(k); NaN for k<0, matching torch.pow.
        return _static_int_pow(k, int(order)) * jnp.sqrt(k)
    # TODO(synk): generic non-integer order uses exp/log pow on the EUP
    # (can bind on v5e's single slow EUP); fine on v6e/v7x.
    return k ** order


def _poly_kernel_body(sigma_ref, xr_ref, xc_ref, out_ref, *, order, normal):
    # xr_ref: (D, TM) slab for this tile's output rows
    # xc_ref: (D, TN) slab for this tile's output cols
    # sigma_ref: (1,) in SMEM ; out_ref: (TM, TN) in VMEM
    xr = xr_ref[...].astype(jnp.float32)
    xc = xc_ref[...].astype(jnp.float32)

    if normal:
        # Pre-scale each point by 1/||x||: rsqrt on (1, T) vectors is O(T)
        # EUP work; the gram of the scaled slabs equals k / (||x_i|| ||x_j||).
        inv_r = lax.rsqrt(jnp.sum(xr * xr, axis=0, keepdims=True))  # (1, TM)
        inv_c = lax.rsqrt(jnp.sum(xc * xc, axis=0, keepdims=True))  # (1, TN)
        xr = xr * inv_r
        xc = xc * inv_c

    # k_tile = xr^T @ xc (contract over the feature axis D) on the MXU.
    # MXU is far from the bottleneck here, so HIGHEST precision is free and
    # avoids compounding error through the pow chain.
    k = lax.dot_general(
        xr, xc,
        dimension_numbers=(((0,), (0,)), ((), ())),
        precision=lax.Precision.HIGHEST,
        preferred_element_type=jnp.float32,
    )

    kp = _apply_power(k, order)

    if normal:
        sigma = sigma_ref[0].astype(jnp.float32)
        kp = kp * (sigma * sigma)  # single scalar-broadcast multiply per tile

    out_ref[...] = kp.astype(out_ref.dtype)


def _round_up(x, m):
    return ((x + m - 1) // m) * m


def _pick_tile(n_pad, max_tile):
    """Largest multiple of 128 that divides n_pad and is <= max_tile."""
    best = 128
    t = 128
    cap = min(n_pad, max(max_tile, 128))
    while t <= cap:
        if n_pad % t == 0:
            best = t
        t += 128
    return best


def poly_kernel(xs, sigma_f, *, order=1, normal=False, tm=None, tn=None,
                out_dtype=jnp.float32, max_tile=1024):
    """Pallas implementation of PolyKernel.forward.

    xs:       (D, N) float32   (feature_dim x num_points)
    sigma_f:  (1,)   float32   (only used when normal=True, matching PyTorch)
    returns   (N, N) out_dtype
    """
    D, N = xs.shape
    xs = xs.astype(jnp.float32)

    # Pad N up to a lane-aligned multiple of 128 so every output tile is full
    # (no masked partial stores). Pad value 1.0 under normal=True keeps the
    # rsqrt finite in the (discarded) pad region.
    n_pad = max(_round_up(N, 128), 128)
    if n_pad != N:
        pad_val = 1.0 if normal else 0.0
        xs_p = jnp.pad(xs, ((0, 0), (0, n_pad - N)), constant_values=pad_val)
    else:
        xs_p = xs

    auto_tm = tm is None
    if tm is None:
        tm = _pick_tile(n_pad, max_tile)
    if tn is None:
        tn = _pick_tile(n_pad, max_tile)
    # Keep >= 2 grid steps along at least one parallel axis (v7x megacore).
    if auto_tm and tm == n_pad and tn == n_pad and n_pad >= 256:
        tm = _pick_tile(n_pad, n_pad // 2)

    grid = (pl.cdiv(n_pad, tm), pl.cdiv(n_pad, tn))
    kernel = functools.partial(_poly_kernel_body, order=order, normal=normal)

    out_itemsize = jnp.dtype(out_dtype).itemsize
    # Scoped VMEM sized from the tile: output double-buffer + input slab
    # double-buffers + headroom for pow-chain temporaries; clamped to stay
    # within v7x's 64 MiB physical VMEM.
    vmem_needed = (2 * tm * tn * out_itemsize
                   + 2 * D * (tm + tn) * 4
                   + 4 * tm * tn * 4)
    vmem_limit = int(min(max(vmem_needed, 32 * 1024 * 1024), 48 * 1024 * 1024))

    cost = pl.CostEstimate(
        flops=2 * n_pad * n_pad * D,
        transcendentals=2 * n_pad if normal else 0,
        bytes_accessed=n_pad * n_pad * out_itemsize + 8 * n_pad * D,
    )

    out_p = pl.pallas_call(
        kernel,
        out_shape=jax.ShapeDtypeStruct((n_pad, n_pad), out_dtype),
        grid_spec=pltpu.PrefetchScalarGridSpec(
            num_scalar_prefetch=0,
            grid=grid,
            in_specs=[
                pl.BlockSpec(memory_space=pltpu.SMEM),            # sigma_f (1,)
                pl.BlockSpec((D, tm), lambda i, j: (0, i)),       # row slab
                pl.BlockSpec((D, tn), lambda i, j: (0, j)),       # col slab
            ],
            out_specs=pl.BlockSpec((tm, tn), lambda i, j: (i, j)),
        ),
        compiler_params=pltpu.CompilerParams(
            dimension_semantics=("parallel", "parallel"),
            vmem_limit_bytes=vmem_limit,
        ),
        cost_estimate=cost,
    )(sigma_f.astype(jnp.float32), xs_p, xs_p)

    if n_pad != N:
        out_p = out_p[:N, :N]
    return out_p


def poly_kernel_ref(xs, sigma_f, *, order=1, normal=False):
    """Pure-JAX reference mirroring the PyTorch module."""
    k = xs.T @ xs
    if normal:
        A = jnp.sum(xs ** 2, axis=0, keepdims=True) * jnp.ones(
            (xs.shape[1], xs.shape[1]), dtype=xs.dtype)
        norm = jnp.sqrt(A) * jnp.sqrt(A.T)
        k = k / norm
        return (k ** order) * sigma_f[0] ** 2
    return k ** order


if __name__ == "__main__":
    key = jax.random.PRNGKey(0)
    D, N = 8, 256  # small feature dim x number of points
    xs = jax.random.normal(key, (D, N), dtype=jnp.float32)

    order = 2
    # sigma_f init matching nn.Parameter(torch.Tensor([1.0])), plus a
    # non-trivial value to exercise the sigma**2 scaling.
    for sigma_val in (1.0, 1.3):
        sigma_f = jnp.array([sigma_val], dtype=jnp.float32)
        for normal in (False, True):
            # Explicit tm=tn=128 -> 2x2 grid, exercising the tiled path.
            out = poly_kernel(xs, sigma_f, order=order, normal=normal,
                              tm=128, tn=128)
            out = jax.block_until_ready(out)
            ref = poly_kernel_ref(xs, sigma_f, order=order, normal=normal)
            assert out.shape == (N, N)
            assert jnp.allclose(out, ref, atol=1e-4, rtol=1e-4), (
                f"mismatch (normal={normal}, sigma={sigma_val}): max abs err "
                f"{jnp.max(jnp.abs(out - ref))}"
            )

    # Default (auto) tiles, including the >=2-grid-step adjustment.
    sigma_f = jnp.array([1.3], dtype=jnp.float32)
    out = jax.block_until_ready(
        poly_kernel(xs, sigma_f, order=order, normal=True))
    ref = poly_kernel_ref(xs, sigma_f, order=order, normal=True)
    assert jnp.allclose(out, ref, atol=1e-4, rtol=1e-4)

    # Non-multiple-of-128 N exercises the wrapper-side padding path.
    N2 = 200
    xs2 = jax.random.normal(jax.random.PRNGKey(1), (D, N2), dtype=jnp.float32)
    for normal in (False, True):
        out2 = jax.block_until_ready(
            poly_kernel(xs2, sigma_f, order=order, normal=normal))
        ref2 = poly_kernel_ref(xs2, sigma_f, order=order, normal=normal)
        assert out2.shape == (N2, N2)
        assert jnp.allclose(out2, ref2, atol=1e-4, rtol=1e-4), (
            f"padded-path mismatch (normal={normal}): max abs err "
            f"{jnp.max(jnp.abs(out2 - ref2))}"
        )

    # Optional bf16 output (halves the dominant N^2 writeback).
    out_bf16 = jax.block_until_ready(
        poly_kernel(xs, sigma_f, order=order, normal=True,
                    out_dtype=jnp.bfloat16))
    assert out_bf16.dtype == jnp.bfloat16
    assert jnp.allclose(out_bf16.astype(jnp.float32), ref,
                        atol=5e-2, rtol=5e-2)

    print("KERNEL_OK")
</pallas_src>

<mosaic_0001>
module attributes {stable_mosaic.version = 11 : i64} {
  func.func @_poly_kernel_body(%arg0: i32, %arg1: i32, %arg2: memref<1xf32, #tpu.memory_space<smem>>, %arg3: memref<8x128xf32, #tpu.memory_space<vmem>>, %arg4: memref<8x128xf32, #tpu.memory_space<vmem>>, %arg5: memref<128x128xf32, #tpu.memory_space<vmem>>) attributes {dimension_semantics = [#tpu.dimension_semantics<parallel>, #tpu.dimension_semantics<parallel>], iteration_bounds = array<i64: 2, 2>, scalar_prefetch = 0 : i64, scratch_operands = 0 : i64, tpu.core_type = #tpu.core_type<tc>, window_params = [{transform_indices = @transform_0, window_bounds = array<i64: 1>}, {transform_indices = @transform_1, window_bounds = array<i64: 8, 128>}, {transform_indices = @transform_2, window_bounds = array<i64: 8, 128>}, {transform_indices = @transform_3, window_bounds = array<i64: 128, 128>}]} {
    %c0 = arith.constant 0 : index
    %c0_0 = arith.constant 0 : index
    %0 = vector.load %arg3[%c0, %c0_0] : memref<8x128xf32, #tpu.memory_space<vmem>>, vector<8x128xf32>
    %c0_1 = arith.constant 0 : index
    %c0_2 = arith.constant 0 : index
    %1 = vector.load %arg4[%c0_1, %c0_2] : memref<8x128xf32, #tpu.memory_space<vmem>>, vector<8x128xf32>
    %cst = arith.constant dense<0.000000e+00> : vector<128x128xf32>
    %2 = tpu.matmul %0, %1, %cst {dimension_numbers = #tpu.dot_dimension_numbers<[0], [0], [1], [1], [0, 1, 1, 1], [], []>, precision = #tpu.contract_precision<fp32>} : vector<8x128xf32>, vector<8x128xf32>, vector<128x128xf32> -> vector<128x128xf32>
    %3 = arith.mulf %2, %2 : vector<128x128xf32>
    %c0_3 = arith.constant 0 : index
    %c0_4 = arith.constant 0 : index
    %4 = vector.load %arg5[%c0_3, %c0_4] : memref<128x128xf32, #tpu.memory_space<vmem>>, vector<128x128xf32>
    tpu.vector_store %arg5[%c0_3, %c0_4], %3 {strides = array<i32>} : memref<128x128xf32, #tpu.memory_space<vmem>>, vector<128x128xf32>,
    return
  }
  func.func @transform_0(%arg0: i32, %arg1: i32) -> i32 {
    %c0_i32 = arith.constant 0 : i32
    %c0_i32_0 = arith.constant 0 : i32
    return %c0_i32 : i32
  }
  func.func @transform_1(%arg0: i32, %arg1: i32) -> (i32, i32) {
    %c0_i32 = arith.constant 0 : i32
    %c0_i32_0 = arith.constant 0 : i32
    return %c0_i32, %arg0 : i32, i32
  }
  func.func @transform_2(%arg0: i32, %arg1: i32) -> (i32, i32) {
    %c0_i32 = arith.constant 0 : i32
    %c0_i32_0 = arith.constant 0 : i32
    return %c0_i32, %arg1 : i32, i32
  }
  func.func @transform_3(%arg0: i32, %arg1: i32) -> (i32, i32) {
    %c0_i32 = arith.constant 0 : i32
    return %arg0, %arg1 : i32, i32
  }
}

</mosaic_0001>

<llo_original>
// kernel: tpu_custom_call.1
$region0: #{tpu_custom_call.1}
  #allocation0 [shape = 'u32[]', space=smem, size = 0x4, offset = 0x4, fixed_abs, tag = 'smem constant byte address 0x4 - core index']
  #allocation1 [shape = 'u32[144,128]{1,0:T(1,128)}', space=vmem, size = 0x12000, scoped, tag = 'internal scratch']
  #allocation2 [shape = 'f32[1]{0:T(128)S(6)}', space=smem, size = 0x200, scoped, tag = 'scoped memory for tpu_custom_call.1']
  %s0 = inlined_call_operand.<no memory space> [shape: f32[1], index: 0, kind: input, shape index: {}]
  %s1 = inlined_call_operand.hbm [shape: f32[8,256], index: 1, kind: input, shape index: {}]
  %s2 = inlined_call_operand.hbm [shape: f32[8,256], index: 2, kind: input, shape index: {}]
  %s3 = inlined_call_operand.hbm [shape: f32[256,256], index: 3, kind: output, shape index: {}]
  %s4 = sld [smem:[#allocation0]]
  $region53: #{tpu_custom_call.1} parent=0
    _
  %s6 = ssub.s32 1, %s4
  %s7 = scalar_select 0, %s6, %s4
  %8 = sst [smem:[#allocation2]] %s0
  $region1: #{tpu_custom_call.1} parent=0
    #allocation3 [shape = 'u8[8192]{0}', space=vmem, size = 0x2000, scoped, tag = 'input window, operand 1']
    #allocation4 [shape = 's32[2]{0}', space=sflag, size = 0x8, scoped, tag = 'scoped memory for tpu_custom_call.1']
    #allocation5 [shape = 's32[2]{0}', space=sflag, size = 0x8, scoped, tag = 'scoped memory for tpu_custom_call.1']
    #allocation6 [shape = 'u8[8192]{0}', space=vmem, size = 0x2000, scoped, tag = 'input window, operand 2']
    #allocation7 [shape = 's32[2]{0}', space=sflag, size = 0x8, scoped, tag = 'scoped memory for tpu_custom_call.1']
    #allocation8 [shape = 'u8[131072]{0}', space=vmem, size = 0x20000, scoped, tag = 'output window, operand 0']
    %9 = vsyncpa [#allocation4], 0
    %s10 = scalar_lea.sflag [#allocation4], 1
    %11 = vsyncpa %s10, 0
    %12 = vsyncpa [#allocation7], 0
    %s13 = scalar_lea.sflag [#allocation7], 1
    %14 = vsyncpa %s13, 0
    %15 = vsyncpa [#allocation5], 0
    %s16 = scalar_lea.sflag [#allocation5], 1
    %17 = vsyncpa %s16, 0
    loop: start=0, step=1, limit=6
    $region2: #{tpu_custom_call.1} parent=1 // loop_pre_header
      _
    $region3: #{tpu_custom_call.1} parent=1 // loop_header
      %s19 = sphi 0, %s23
      %p20 = scmp.ge.s32.totalorder %s19, 6
      %s26 = sphi 0, %s38
      %s27 = sphi 0, %s34
      %s28 = sphi 0, %s26
      %s29 = sphi 0, %s27
      %s30 = sphi 0, %s28
      %s31 = sphi 0, %s29
      %s39 = sphi 0, %s39
      %s41 = sphi 0, %s39
      %s42 = sphi 0, %s41
      %s56 = sphi 0, %s42
      %s62 = sphi 0, %s64
      %s65 = sphi 0, %s62
      %s66 = sphi 0, %s65
      %s82 = sphi 0, %s66
      %s88 = sphi 0, %s90
      %s91 = sphi 0, %s88
      %s92 = sphi 0, %s91
      %s108 = sphi 0, %s92
      %s116 = sphi 0, %s118
      %s119 = sphi 0, %s116
      %s120 = sphi 0, %s119
      %s136 = sphi 0, %s120
    $region4: #{tpu_custom_call.1} parent=1 // loop_header_branch
      %22 = sbr.rel (%p20) target = $region8
    $region5: #{tpu_custom_call.1} parent=1 // loop_body
      %s24 = ssub.s32 %s19, 1
      %s25 = ssub.s32 %s19, 2
      %s32 = sadd.s32 1, %s27
      %p33 = scmp.ge.s32.totalorder %s32, 2
      %s34 = scalar_select %p33, 0, %s32
      %s35 = sadd.s32 1, %s26
      %s36 = scalar_select %p33, %s35, %s26
      %p37 = scmp.ge.s32.totalorder %s36, 2
      %s38 = scalar_select %p37, 0, %s36
      %s40 = sadd.s32 %s39, 1
      %p43 = scmp.eq.s32.totalorder %s19, 3
      %p44 = scmp.ne.s32.totalorder %s39, %s41
      %p45 = scmp.eq.s32.totalorder %s19, 0
      %p46 = por %p44, %p45
      %p47 = scmp.ne.s32.totalorder %s39, %s41
      %p48 = scmp.eq.s32.totalorder %s24, 3
      %p49 = por %p47, %p48
      %p50 = scmp.ne.s32.totalorder %s41, %s42
      %p51 = scmp.eq.s32.totalorder %s24, 0
      %p52 = por %p50, %p51
      %p53 = scmp.ne.s32.totalorder %s41, %s42
      %p54 = scmp.eq.s32.totalorder %s25, 3
      %p55 = por %p53, %p54
      %p57 = scmp.ne.s32.totalorder %s42, %s56
      %p58 = scmp.eq.s32.totalorder %s25, 0
      %p59 = por %p57, %p58
      %s60 = ssub.s32 %s26, %s38
      %p61 = scmp.eq.s32.totalorder %s60, 0
      %s63 = sadd.s32 %s62, 1
      %s64 = scalar_select %p61, %s62, %s63
      %p67 = pneg %p61
      %p68 = scmp.eq.s32.totalorder %s19, 3
      %p69 = por %p67, %p68
      %p70 = scmp.ne.s32.totalorder %s62, %s65
      %p71 = scmp.eq.s32.totalorder %s19, 0
      %p72 = por %p70, %p71
      %p73 = scmp.ne.s32.totalorder %s62, %s65
      %p74 = scmp.eq.s32.totalorder %s24, 3
      %p75 = por %p73, %p74
      %p76 = scmp.ne.s32.totalorder %s65, %s66
      %p77 = scmp.eq.s32.totalorder %s24, 0
      %p78 = por %p76, %p77
      %p79 = scmp.ne.s32.totalorder %s65, %s66
      %p80 = scmp.eq.s32.totalorder %s25, 3
      %p81 = por %p79, %p80
      %p83 = scmp.ne.s32.totalorder %s66, %s82
      %p84 = scmp.eq.s32.totalorder %s25, 0
      %p85 = por %p83, %p84
      %s86 = ssub.s32 %s27, %s34
      %p87 = scmp.eq.s32.totalorder %s86, 0
      %s89 = sadd.s32 %s88, 1
      %s90 = scalar_select %p87, %s88, %s89
      %p93 = pneg %p87
      %p94 = scmp.eq.s32.totalorder %s19, 3
      %p95 = por %p93, %p94
      %p96 = scmp.ne.s32.totalorder %s88, %s91
      %p97 = scmp.eq.s32.totalorder %s19, 0
      %p98 = por %p96, %p97
      %p99 = scmp.ne.s32.totalorder %s88, %s91
      %p100 = scmp.eq.s32.totalorder %s24, 3
      %p101 = por %p99, %p100
      %p102 = scmp.ne.s32.totalorder %s91, %s92
      %p103 = scmp.eq.s32.totalorder %s24, 0
      %p104 = por %p102, %p103
      %p105 = scmp.ne.s32.totalorder %s91, %s92
      %p106 = scmp.eq.s32.totalorder %s25, 3
      %p107 = por %p105, %p106
      %p109 = scmp.ne.s32.totalorder %s92, %s108
      %p110 = scmp.eq.s32.totalorder %s25, 0
      %p111 = por %p109, %p110
      %s112 = ssub.s32 %s26, %s38
      %s113 = ssub.s32 %s27, %s34
      %s114 = sor.u32 %s112, %s113
      %p115 = scmp.eq.s32.totalorder %s114, 0
      %s117 = sadd.s32 %s116, 1
      %s118 = scalar_select %p115, %s116, %s117
      %p121 = pneg %p115
      %p122 = scmp.eq.s32.totalorder %s19, 3
      %p123 = por %p121, %p122
      %p124 = scmp.ne.s32.totalorder %s116, %s119
      %p125 = scmp.eq.s32.totalorder %s19, 0
      %p126 = por %p124, %p125
      %p127 = scmp.ne.s32.totalorder %s116, %s119
      %p128 = scmp.eq.s32.totalorder %s24, 3
      %p129 = por %p127, %p128
      %p130 = scmp.ne.s32.totalorder %s119, %s120
      %p131 = scmp.eq.s32.totalorder %s24, 0
      %p132 = por %p130, %p131
      %p133 = scmp.ne.s32.totalorder %s119, %s120
      %p134 = scmp.eq.s32.totalorder %s25, 3
      %p135 = por %p133, %p134
      %p137 = scmp.ne.s32.totalorder %s120, %s136
      %p138 = scmp.eq.s32.totalorder %s25, 0
      %p139 = por %p137, %p138
      %p140 = scmp.le.s32.totalorder 1, %s19
      %p141 = scmp.lt.s32.totalorder %s19, 5
      %p142 = pnand %p140, %p141
      %p143 = pneg %p142
      // Predicated region
      $region9: #{tpu_custom_call.1} parent=5 // pred_check
        _
      $region10: #{tpu_custom_call.1} parent=5 // pred_check_branch
        %145 = sbr.rel (%p142) target = $region12
      $region11: #{tpu_custom_call.1} parent=5 // pred_region
        %s146 = ssub.s32 %s19, 1
        // Predicated region
        $region13: #{tpu_custom_call.1} parent=11 // pred_check
          %p147 = pneg %p52
        $region14: #{tpu_custom_call.1} parent=11 // pred_check_branch
          %149 = sbr.rel (%p147) target = $region16
        $region15: #{tpu_custom_call.1} parent=11 // pred_region
          _
        $region16: #{tpu_custom_call.1} parent=11 // pred_fallthru
          _
      $region12: #{tpu_custom_call.1} parent=5 // pred_fallthru
        _
      %p150 = scmp.lt.s32.totalorder %s19, 4
      // Predicated region
      $region17: #{tpu_custom_call.1} parent=5 // pred_check
        %p151 = pneg %p150
      $region18: #{tpu_custom_call.1} parent=5 // pred_check_branch
        %153 = sbr.rel (%p151) target = $region20
      $region19: #{tpu_custom_call.1} parent=5 // pred_region
        // Predicated region
        $region21: #{tpu_custom_call.1} parent=19 // pred_check
          %p154 = pneg %p72
        $region22: #{tpu_custom_call.1} parent=19 // pred_check_branch
          %156 = sbr.rel (%p154) target = $region24
        $region23: #{tpu_custom_call.1} parent=19 // pred_region
          %s157 = sand.u32 %s62, 1
          %s158 = scalar_lea.sflag [#allocation4], %s157
          %s159 = sand.u32 %s62, 1
          %s160 = smul.addr %s159, 8
          %s161 = scalar_lea.vmem [#allocation3], %s160
          %s163 = ssub.s32 128, 128
          %164 = vsyncadd %s158, %s163
          %s165 = smul.addr %s26, 128
          %s166 = scalar_lea.hbm %s1, %s165
          %s168 = sshll.u32 %s161, 4
          %s169 = int_to_ptr.vmem [resolvable:$true] %s168
          %171 = dma.hbm_to_vmem [thread:$0]  %s166, 128, %s169, %s158
        $region24: #{tpu_custom_call.1} parent=19 // pred_fallthru
          _
        // Predicated region
        $region25: #{tpu_custom_call.1} parent=19 // pred_check
          %p172 = pneg %p98
        $region26: #{tpu_custom_call.1} parent=19 // pred_check_branch
          %174 = sbr.rel (%p172) target = $region28
        $region27: #{tpu_custom_call.1} parent=19 // pred_region
          %s175 = sand.u32 %s88, 1
          %s176 = scalar_lea.sflag [#allocation7], %s175
          %s177 = sand.u32 %s88, 1
          %s178 = smul.addr %s177, 8
          %s179 = scalar_lea.vmem [#allocation6], %s178
          %s181 = ssub.s32 128, 128
          %182 = vsyncadd %s176, %s181
          %s183 = smul.addr %s27, 128
          %s184 = scalar_lea.hbm %s2, %s183
          %s186 = sshll.u32 %s179, 4
          %s187 = int_to_ptr.vmem [resolvable:$true] %s186
          %189 = dma.hbm_to_vmem [thread:$0]  %s184, 128, %s187, %s176
        $region28: #{tpu_custom_call.1} parent=19 // pred_fallthru
          _
      $region20: #{tpu_custom_call.1} parent=5 // pred_fallthru
        _
      %p190 = scmp.le.s32.totalorder 1, %s19
      %p191 = scmp.lt.s32.totalorder %s19, 5
      %p192 = pnand %p190, %p191
      %p193 = pneg %p192
      // Predicated region
      $region29: #{tpu_custom_call.1} parent=5 // pred_check
        _
      $region30: #{tpu_custom_call.1} parent=5 // pred_check_branch
        %195 = sbr.rel (%p192) target = $region32
      $region31: #{tpu_custom_call.1} parent=5 // pred_region
        %s196 = ssub.s32 %s19, 1
        %s197 = sand.u32 %s65, 1
        %s198 = scalar_lea.sflag [#allocation4], %s197
        %s199 = sand.u32 %s65, 1
        %s200 = smul.addr %s199, 8
        %s201 = scalar_lea.vmem [#allocation3], %s200
        // Predicated region
        $region33: #{tpu_custom_call.1} parent=31 // pred_check
          %p202 = pneg %p78
        $region34: #{tpu_custom_call.1} parent=31 // pred_check_branch
          %204 = sbr.rel (%p202) target = $region36
        $region35: #{tpu_custom_call.1} parent=31 // pred_region
          %205 = dma.done %s198, 128
        $region36: #{tpu_custom_call.1} parent=31 // pred_fallthru
          _
        %s206 = sand.u32 %s91, 1
        %s207 = scalar_lea.sflag [#allocation7], %s206
        %s208 = sand.u32 %s91, 1
        %s209 = smul.addr %s208, 8
        %s210 = scalar_lea.vmem [#allocation6], %s209
        // Predicated region
        $region37: #{tpu_custom_call.1} parent=31 // pred_check
          %p211 = pneg %p104
        $region38: #{tpu_custom_call.1} parent=31 // pred_check_branch
          %213 = sbr.rel (%p211) target = $region40
        $region39: #{tpu_custom_call.1} parent=31 // pred_region
          %214 = dma.done %s207, 128
        $region40: #{tpu_custom_call.1} parent=31 // pred_fallthru
          _
        %p215 = pneg %p52
        %p216 = pneg %p49
        %s217 = sand.u32 %s65, 1
        %s218 = scalar_lea.sflag [#allocation4], %s217
        %s219 = sand.u32 %s65, 1
        %s220 = smul.addr %s219, 8
        %s221 = scalar_lea.vmem [#allocation3], %s220
        %p222 = pneg %p78
        %p223 = pneg %p75
        %s224 = sand.u32 %s91, 1
        %s225 = scalar_lea.sflag [#allocation7], %s224
        %s226 = sand.u32 %s91, 1
        %s227 = smul.addr %s226, 8
        %s228 = scalar_lea.vmem [#allocation6], %s227
        %p229 = pneg %p104
        %p230 = pneg %p101
        %p231 = pneg %p132
        %p232 = pneg %p129
        %s233 = sand.u32 %s119, 1
        %s234 = scalar_lea.sflag [#allocation5], %s233
        %s235 = sand.u32 %s119, 1
        %s236 = smul.addr %s235, 128
        %s237 = scalar_lea.vmem [#allocation8], %s236
        %s238 = smul.u32 16, %s28
        %v239 = vld [vmem:[%s201] sm:$0xff]
        %v240 = vld [vmem:[%s210] sm:$0xff]
        %241 = vxpose.xlu0.b32.start [1/16] %v239, 128
        %242 = vxpose.xlu0.b32.cont [2/16] 0.0, 128
        %243 = vxpose.xlu0.b32.cont [3/16] 0.0, 128
        %244 = vxpose.xlu0.b32.cont [4/16] 0.0, 128
        %245 = vxpose.xlu0.b32.cont [5/16] 0.0, 128
        %246 = vxpose.xlu0.b32.cont [6/16] 0.0, 128
        %247 = vxpose.xlu0.b32.cont [7/16] 0.0, 128
        %248 = vxpose.xlu0.b32.cont [8/16] 0.0, 128
        %249 = vxpose.xlu0.b32.cont [9/16] 0.0, 128
        %250 = vxpose.xlu0.b32.cont [10/16] 0.0, 128
        %251 = vxpose.xlu0.b32.cont [11/16] 0.0, 128
        %252 = vxpose.xlu0.b32.cont [12/16] 0.0, 128
        %253 = vxpose.xlu0.b32.cont [13/16] 0.0, 128
        %254 = vxpose.xlu0.b32.cont [14/16] 0.0, 128
        %255 = vxpose.xlu0.b32.cont [15/16] 0.0, 128
        %256 = vxpose.xlu0.b32.end [16/16] 0.0, 128
        %v257 = vpop.trf.xlu0
        %v258 = vpop.trf.xlu0
        %v259 = vpop.trf.xlu0
        %v260 = vpop.trf.xlu0
        %v261 = vpop.trf.xlu0
        %v262 = vpop.trf.xlu0
        %v263 = vpop.trf.xlu0
        %v264 = vpop.trf.xlu0
        %v265 = vpop.trf.xlu0
        %v266 = vpop.trf.xlu0
        %v267 = vpop.trf.xlu0
        %v268 = vpop.trf.xlu0
        %v269 = vpop.trf.xlu0
        %v270 = vpop.trf.xlu0
        %v271 = vpop.trf.xlu0
        %v272 = vpop.trf.xlu0
        %vm273 = vcmask 64512
        %v275 = vsel %vm273, %v257, 0
        %v278 = vsel %vm273, %v258, 0
        %v281 = vsel %vm273, %v259, 0
        %v284 = vsel %vm273, %v260, 0
        %v287 = vsel %vm273, %v261, 0
        %v290 = vsel %vm273, %v262, 0
        %v293 = vsel %vm273, %v263, 0
        %v296 = vsel %vm273, %v264, 0
        %v299 = vsel %vm273, %v265, 0
        %v302 = vsel %vm273, %v266, 0
        %v305 = vsel %vm273, %v267, 0
        %v308 = vsel %vm273, %v268, 0
        %v311 = vsel %vm273, %v269, 0
        %v314 = vsel %vm273, %v270, 0
        %v317 = vsel %vm273, %v271, 0
        %v320 = vsel %vm273, %v272, 0
        %322 = vmatprep.subr.mxu0 0.0
        %v323 = vand.u32 %v240, 4294901760
        %324 = vmatpush1.msra.mxu0 %v323
        %325 = vmatprep.subr.mxu0 0.0
        %326 = vmatpush1.msra.mxu0 0.0
        %327 = vmatprep.subr.mxu0 0.0
        %328 = vmatpush1.msra.mxu0 0.0
        %329 = vmatprep.subr.mxu0 0.0
        %330 = vmatpush1.msra.mxu0 0.0
        %331 = vmatprep.subr.mxu0 0.0
        %332 = vmatpush1.msra.mxu0 0.0
        %333 = vmatprep.subr.mxu0 0.0
        %334 = vmatpush1.msra.mxu0 0.0
        %335 = vmatprep.subr.mxu0 0.0
        %336 = vmatpush1.msra.mxu0 0.0
        %337 = vmatprep.subr.mxu0 0.0
        %338 = vmatpush1.msra.mxu0 0.0
        %339 = vmatprep.subr.mxu0 0.0
        %340 = vmatpush1.msra.mxu0 0.0
        %341 = vmatprep.subr.mxu0 0.0
        %342 = vmatpush1.msra.mxu0 0.0
        %343 = vmatprep.subr.mxu0 0.0
        %344 = vmatpush1.msra.mxu0 0.0
        %345 = vmatprep.subr.mxu0 0.0
        %346 = vmatpush1.msra.mxu0 0.0
        %347 = vmatprep.subr.mxu0 0.0
        %348 = vmatpush1.msra.mxu0 0.0
        %349 = vmatprep.subr.mxu0 0.0
        %350 = vmatpush1.msra.mxu0 0.0
        %351 = vmatprep.subr.mxu0 0.0
        %352 = vmatpush1.msra.mxu0 0.0
        %353 = vmatprep.subr.mxu0 0.0
        %354 = vmatpush1.msra.mxu0 0.0
        %355 = vmatprep.subr.mxu0 0.0
        %356 = vmatpush1.msra.mxu0 0.0
        %357 = vmatprep.subr.mxu0 0.0
        %358 = vmatpush1.msra.mxu0 0.0
        %359 = vmatprep.subr.mxu0 0.0
        %360 = vmatpush1.msra.mxu0 0.0
        %361 = vmatprep.subr.mxu0 0.0
        %362 = vmatpush1.msra.mxu0 0.0
        %363 = vmatprep.subr.mxu0 0.0
        %364 = vmatpush1.msra.mxu0 0.0
        %365 = vmatprep.subr.mxu0 0.0
        %366 = vmatpush1.msra.mxu0 0.0
        %367 = vmatprep.subr.mxu0 0.0
        %368 = vmatpush1.msra.mxu0 0.0
        %369 = vmatprep.subr.mxu0 0.0
        %370 = vmatpush1.msra.mxu0 0.0
        %371 = vmatprep.subr.mxu0 0.0
        %372 = vmatpush1.msra.mxu0 0.0
        %373 = vmatprep.subr.mxu0 0.0
        %374 = vmatpush1.msra.mxu0 0.0
        %375 = vmatprep.subr.mxu0 0.0
        %376 = vmatpush1.msra.mxu0 0.0
        %377 = vmatprep.subr.mxu0 0.0
        %378 = vmatpush1.msra.mxu0 0.0
        %379 = vmatprep.subr.mxu0 0.0
        %380 = vmatpush1.msra.mxu0 0.0
        %381 = vmatprep.subr.mxu0 0.0
        %382 = vmatpush1.msra.mxu0 0.0
        %383 = vmatprep.subr.mxu0 0.0
        %384 = vmatpush1.msra.mxu0 0.0
        %385 = vmatprep.subr.mxu0 0.0
        %386 = vmatpush1.msra.mxu0 0.0
        %387 = vmatprep.mubr.f32.mxu0 0.0
        %v388 = vand.u32 %v275, 4294901760
        %v389 = vsub.f32 %v275, %v388
        %v390 = vand.u32 %v389, 4294901760
        %v391 = vsub.f32 %v389, %v390
        %v392 = vand.u32 %v391, 4294901760
        %393 = vmatmul.mubr.f32.gmra.mrb[0].mxu0 %v392
        %v394 = vpop.f32.mrb[0].mxu0
        %v395 = vadd.f32 0.0, %v394
        %v396 = vpop.f32.mrb[0].mxu0
        %397 = vmatprep.mubr.f32.mxu0 0.0
        %v398 = vand.u32 %v278, 4294901760
        %v399 = vsub.f32 %v278, %v398
        %v400 = vand.u32 %v399, 4294901760
        %v401 = vsub.f32 %v399, %v400
        %v402 = vand.u32 %v401, 4294901760
        %403 = vmatmul.mubr.f32.gmra.mrb[0].mxu0 %v402
        %v404 = vpop.f32.mrb[0].mxu0
        %v405 = vadd.f32 0.0, %v404
        %v406 = vpop.f32.mrb[0].mxu0
        %407 = vmatprep.mubr.f32.mxu0 0.0
        %v408 = vand.u32 %v281, 4294901760
        %v409 = vsub.f32 %v281, %v408
        %v410 = vand.u32 %v409, 4294901760
        %v411 = vsub.f32 %v409, %v410
        %v412 = vand.u32 %v411, 4294901760
        %413 = vmatmul.mubr.f32.gmra.mrb[0].mxu0 %v412
        %v414 = vpop.f32.mrb[0].mxu0
        %v415 = vadd.f32 0.0, %v414
        %v416 = vpop.f32.mrb[0].mxu0
        %417 = vmatprep.mubr.f32.mxu0 0.0
        %v418 = vand.u32 %v284, 4294901760
        %v419 = vsub.f32 %v284, %v418
        %v420 = vand.u32 %v419, 4294901760
        %v421 = vsub.f32 %v419, %v420
        %v422 = vand.u32 %v421, 4294901760
        %423 = vmatmul.mubr.f32.gmra.mrb[0].mxu0 %v422
        %v424 = vpop.f32.mrb[0].mxu0
        %v425 = vadd.f32 0.0, %v424
        %v426 = vpop.f32.mrb[0].mxu0
        %427 = vmatprep.mubr.f32.mxu0 0.0
        %v428 = vand.u32 %v287, 4294901760
        %v429 = vsub.f32 %v287, %v428
        %v430 = vand.u32 %v429, 4294901760
        %v431 = vsub.f32 %v429, %v430
        %v432 = vand.u32 %v431, 4294901760
        %433 = vmatmul.mubr.f32.gmra.mrb[0].mxu0 %v432
        %v434 = vpop.f32.mrb[0].mxu0
        %v435 = vadd.f32 0.0, %v434
        %v436 = vpop.f32.mrb[0].mxu0
        %437 = vmatprep.mubr.f32.mxu0 0.0
        %v438 = vand.u32 %v290, 4294901760
        %v439 = vsub.f32 %v290, %v438
        %v440 = vand.u32 %v439, 4294901760
        %v441 = vsub.f32 %v439, %v440
        %v442 = vand.u32 %v441, 4294901760
        %443 = vmatmul.mubr.f32.gmra.mrb[0].mxu0 %v442
        %v444 = vpop.f32.mrb[0].mxu0
        %v445 = vadd.f32 0.0, %v444
        %v446 = vpop.f32.mrb[0].mxu0
        %447 = vmatprep.mubr.f32.mxu0 0.0
        %v448 = vand.u32 %v293, 4294901760
        %v449 = vsub.f32 %v293, %v448
        %v450 = vand.u32 %v449, 4294901760
        %v451 = vsub.f32 %v449, %v450
        %v452 = vand.u32 %v451, 4294901760
        %453 = vmatmul.mubr.f32.gmra.mrb[0].mxu0 %v452
        %v454 = vpop.f32.mrb[0].mxu0
        %v455 = vadd.f32 0.0, %v454
        %v456 = vpop.f32.mrb[0].mxu0
        %457 = vmatprep.mubr.f32.mxu0 0.0
        %v458 = vand.u32 %v296, 4294901760
        %v459 = vsub.f32 %v296, %v458
        %v460 = vand.u32 %v459, 4294901760
        %v461 = vsub.f32 %v459, %v460
        %v462 = vand.u32 %v461, 4294901760
        %463 = vmatmul.mubr.f32.gmra.mrb[0].mxu0 %v462
        %v464 = vpop.f32.mrb[0].mxu0
        %v465 = vadd.f32 0.0, %v464
        %v466 = vpop.f32.mrb[0].mxu0
        %467 = vmatprep.mubr.f32.mxu0 0.0
        %v468 = vand.u32 %v299, 4294901760
        %v469 = vsub.f32 %v299, %v468
        %v470 = vand.u32 %v469, 4294901760
        %v471 = vsub.f32 %v469, %v470
        %v472 = vand.u32 %v471, 4294901760
        %473 = vmatmul.mubr.f32.gmra.mrb[0].mxu0 %v472
        %v474 = vpop.f32.mrb[0].mxu0
        %v475 = vadd.f32 0.0, %v474
        %v476 = vpop.f32.mrb[0].mxu0
        %477 = vmatprep.mubr.f32.mxu0 0.0
        %v478 = vand.u32 %v302, 4294901760
        %v479 = vsub.f32 %v302, %v478
        %v480 = vand.u32 %v479, 4294901760
        %v481 = vsub.f32 %v479, %v480
        %v482 = vand.u32 %v481, 4294901760
        %483 = vmatmul.mubr.f32.gmra.mrb[0].mxu0 %v482
        %v484 = vpop.f32.mrb[0].mxu0
        %v485 = vadd.f32 0.0, %v484
        %v486 = vpop.f32.mrb[0].mxu0
        %487 = vmatprep.mubr.f32.mxu0 0.0
        %v488 = vand.u32 %v305, 4294901760
        %v489 = vsub.f32 %v305, %v488
        %v490 = vand.u32 %v489, 4294901760
        %v491 = vsub.f32 %v489, %v490
        %v492 = vand.u32 %v491, 4294901760
        %493 = vmatmul.mubr.f32.gmra.mrb[0].mxu0 %v492
        %v494 = vpop.f32.mrb[0].mxu0
        %v495 = vadd.f32 0.0, %v494
        %v496 = vpop.f32.mrb[0].mxu0
        %497 = vmatprep.mubr.f32.mxu0 0.0
        %v498 = vand.u32 %v308, 4294901760
        %v499 = vsub.f32 %v308, %v498
        %v500 = vand.u32 %v499, 4294901760
        %v501 = vsub.f32 %v499, %v500
        %v502 = vand.u32 %v501, 4294901760
        %503 = vmatmul.mubr.f32.gmra.mrb[0].mxu0 %v502
        %v504 = vpop.f32.mrb[0].mxu0
        %v505 = vadd.f32 0.0, %v504
        %v506 = vpop.f32.mrb[0].mxu0
        %507 = vmatprep.mubr.f32.mxu0 0.0
        %v508 = vand.u32 %v311, 4294901760
        %v509 = vsub.f32 %v311, %v508
        %v510 = vand.u32 %v509, 4294901760
        %v511 = vsub.f32 %v509, %v510
        %v512 = vand.u32 %v511, 4294901760
        %513 = vmatmul.mubr.f32.gmra.mrb[0].mxu0 %v512
        %v514 = vpop.f32.mrb[0].mxu0
        %v515 = vadd.f32 0.0, %v514
        %v516 = vpop.f32.mrb[0].mxu0
        %517 = vmatprep.mubr.f32.mxu0 0.0
        %v518 = vand.u32 %v314, 4294901760
        %v519 = vsub.f32 %v314, %v518
        %v520 = vand.u32 %v519, 4294901760
        %v521 = vsub.f32 %v519, %v520
        %v522 = vand.u32 %v521, 4294901760
        %523 = vmatmul.mubr.f32.gmra.mrb[0].mxu0 %v522
        %v524 = vpop.f32.mrb[0].mxu0
        %v525 = vadd.f32 0.0, %v524
        %v526 = vpop.f32.mrb[0].mxu0
        %527 = vmatprep.mubr.f32.mxu0 0.0
        %v528 = vand.u32 %v317, 4294901760
        %v529 = vsub.f32 %v317, %v528
        %v530 = vand.u32 %v529, 4294901760
        %v531 = vsub.f32 %v529, %v530
        %v532 = vand.u32 %v531, 4294901760
        %533 = vmatmul.mubr.f32.gmra.mrb[0].mxu0 %v532
        %v534 = vpop.f32.mrb[0].mxu0
        %v535 = vadd.f32 0.0, %v534
        %v536 = vpop.f32.mrb[0].mxu0
        %537 = vmatprep.mubr.f32.mxu0 0.0
        %v538 = vand.u32 %v320, 4294901760
        %v539 = vsub.f32 %v320, %v538
        %v540 = vand.u32 %v539, 4294901760
        %v541 = vsub.f32 %v539, %v540
        %v542 = vand.u32 %v541, 4294901760
        %543 = vmatmul.mubr.f32.gmra.mrb[0].mxu0 %v542
        %v544 = vpop.f32.mrb[0].mxu0
        %v545 = vadd.f32 0.0, %v544
        %v546 = vpop.f32.mrb[0].mxu0
        %547 = vdwg.mxu0
        %548 = vmatprep.subr.mxu0 0.0
        %v549 = vand.u32 %v240, 4294901760
        %v550 = vsub.f32 %v240, %v549
        %v551 = vand.u32 %v550, 4294901760
        %v552 = vsub.f32 %v550, %v551
        %v553 = vand.u32 %v552, 4294901760
        %554 = vmatpush1.msra.mxu0 %v553
        %555 = vmatprep.subr.mxu0 0.0
        %556 = vmatpush1.msra.mxu0 0.0
        %557 = vmatprep.subr.mxu0 0.0
        %558 = vmatpush1.msra.mxu0 0.0
        %559 = vmatprep.subr.mxu0 0.0
        %560 = vmatpush1.msra.mxu0 0.0
        %561 = vmatprep.subr.mxu0 0.0
        %562 = vmatpush1.msra.mxu0 0.0
        %563 = vmatprep.subr.mxu0 0.0
        %564 = vmatpush1.msra.mxu0 0.0
        %565 = vmatprep.subr.mxu0 0.0
        %566 = vmatpush1.msra.mxu0 0.0
        %567 = vmatprep.subr.mxu0 0.0
        %568 = vmatpush1.msra.mxu0 0.0
        %569 = vmatprep.subr.mxu0 0.0
        %570 = vmatpush1.msra.mxu0 0.0
        %571 = vmatprep.subr.mxu0 0.0
        %572 = vmatpush1.msra.mxu0 0.0
        %573 = vmatprep.subr.mxu0 0.0
        %574 = vmatpush1.msra.mxu0 0.0
        %575 = vmatprep.subr.mxu0 0.0
        %576 = vmatpush1.msra.mxu0 0.0
        %577 = vmatprep.subr.mxu0 0.0
        %578 = vmatpush1.msra.mxu0 0.0
        %579 = vmatprep.subr.mxu0 0.0
        %580 = vmatpush1.msra.mxu0 0.0
        %581 = vmatprep.subr.mxu0 0.0
        %582 = vmatpush1.msra.mxu0 0.0
        %583 = vmatprep.subr.mxu0 0.0
        %584 = vmatpush1.msra.mxu0 0.0
        %585 = vmatprep.subr.mxu0 0.0
        %586 = vmatpush1.msra.mxu0 0.0
        %587 = vmatprep.subr.mxu0 0.0
        %588 = vmatpush1.msra.mxu0 0.0
        %589 = vmatprep.subr.mxu0 0.0
        %590 = vmatpush1.msra.mxu0 0.0
        %591 = vmatprep.subr.mxu0 0.0
        %592 = vmatpush1.msra.mxu0 0.0
        %593 = vmatprep.subr.mxu0 0.0
        %594 = vmatpush1.msra.mxu0 0.0
        %595 = vmatprep.subr.mxu0 0.0
        %596 = vmatpush1.msra.mxu0 0.0
        %597 = vmatprep.subr.mxu0 0.0
        %598 = vmatpush1.msra.mxu0 0.0
        %599 = vmatprep.subr.mxu0 0.0
        %600 = vmatpush1.msra.mxu0 0.0
        %601 = vmatprep.subr.mxu0 0.0
        %602 = vmatpush1.msra.mxu0 0.0
        %603 = vmatprep.subr.mxu0 0.0
        %604 = vmatpush1.msra.mxu0 0.0
        %605 = vmatprep.subr.mxu0 0.0
        %606 = vmatpush1.msra.mxu0 0.0
        %607 = vmatprep.subr.mxu0 0.0
        %608 = vmatpush1.msra.mxu0 0.0
        %609 = vmatprep.subr.mxu0 0.0
        %610 = vmatpush1.msra.mxu0 0.0
        %611 = vmatprep.subr.mxu0 0.0
        %612 = vmatpush1.msra.mxu0 0.0
        %613 = vmatprep.subr.mxu0 0.0
        %614 = vmatpush1.msra.mxu0 0.0
        %615 = vmatprep.subr.mxu0 0.0
        %616 = vmatpush1.msra.mxu0 0.0
        %617 = vmatprep.mubr.f32.mxu0 0.0
        %v618 = vand.u32 %v275, 4294901760
        %619 = vmatmul.mubr.f32.gmra.mrb[0].mxu0 %v618
        %v620 = vpop.f32.mrb[0].mxu0
        %v621 = vadd.f32 %v395, %v620
        %v622 = vpop.f32.mrb[0].mxu0
        %623 = vmatprep.mubr.f32.mxu0 0.0
        %v624 = vand.u32 %v278, 4294901760
        %625 = vmatmul.mubr.f32.gmra.mrb[0].mxu0 %v624
        %v626 = vpop.f32.mrb[0].mxu0
        %v627 = vadd.f32 %v405, %v626
        %v628 = vpop.f32.mrb[0].mxu0
        %629 = vmatprep.mubr.f32.mxu0 0.0
        %v630 = vand.u32 %v281, 4294901760
        %631 = vmatmul.mubr.f32.gmra.mrb[0].mxu0 %v630
        %v632 = vpop.f32.mrb[0].mxu0
        %v633 = vadd.f32 %v415, %v632
        %v634 = vpop.f32.mrb[0].mxu0
        %635 = vmatprep.mubr.f32.mxu0 0.0
        %v636 = vand.u32 %v284, 4294901760
        %637 = vmatmul.mubr.f32.gmra.mrb[0].mxu0 %v636
        %v638 = vpop.f32.mrb[0].mxu0
        %v639 = vadd.f32 %v425, %v638
        %v640 = vpop.f32.mrb[0].mxu0
        %641 = vmatprep.mubr.f32.mxu0 0.0
        %v642 = vand.u32 %v287, 4294901760
        %643 = vmatmul.mubr.f32.gmra.mrb[0].mxu0 %v642
        %v644 = vpop.f32.mrb[0].mxu0
        %v645 = vadd.f32 %v435, %v644
        %v646 = vpop.f32.mrb[0].mxu0
        %647 = vmatprep.mubr.f32.mxu0 0.0
        %v648 = vand.u32 %v290, 4294901760
        %649 = vmatmul.mubr.f32.gmra.mrb[0].mxu0 %v648
        %v650 = vpop.f32.mrb[0].mxu0
        %v651 = vadd.f32 %v445, %v650
        %v652 = vpop.f32.mrb[0].mxu0
        %653 = vmatprep.mubr.f32.mxu0 0.0
        %v654 = vand.u32 %v293, 4294901760
        %655 = vmatmul.mubr.f32.gmra.mrb[0].mxu0 %v654
        %v656 = vpop.f32.mrb[0].mxu0
        %v657 = vadd.f32 %v455, %v656
        %v658 = vpop.f32.mrb[0].mxu0
        %659 = vmatprep.mubr.f32.mxu0 0.0
        %v660 = vand.u32 %v296, 4294901760
        %661 = vmatmul.mubr.f32.gmra.mrb[0].mxu0 %v660
        %v662 = vpop.f32.mrb[0].mxu0
        %v663 = vadd.f32 %v465, %v662
        %v664 = vpop.f32.mrb[0].mxu0
        %665 = vmatprep.mubr.f32.mxu0 0.0
        %v666 = vand.u32 %v299, 4294901760
        %667 = vmatmul.mubr.f32.gmra.mrb[0].mxu0 %v666
        %v668 = vpop.f32.mrb[0].mxu0
        %v669 = vadd.f32 %v475, %v668
        %v670 = vpop.f32.mrb[0].mxu0
        %671 = vmatprep.mubr.f32.mxu0 0.0
        %v672 = vand.u32 %v302, 4294901760
        %673 = vmatmul.mubr.f32.gmra.mrb[0].mxu0 %v672
        %v674 = vpop.f32.mrb[0].mxu0
        %v675 = vadd.f32 %v485, %v674
        %v676 = vpop.f32.mrb[0].mxu0
        %677 = vmatprep.mubr.f32.mxu0 0.0
        %v678 = vand.u32 %v305, 4294901760
        %679 = vmatmul.mubr.f32.gmra.mrb[0].mxu0 %v678
        %v680 = vpop.f32.mrb[0].mxu0
        %v681 = vadd.f32 %v495, %v680
        %v682 = vpop.f32.mrb[0].mxu0
        %683 = vmatprep.mubr.f32.mxu0 0.0
        %v684 = vand.u32 %v308, 4294901760
        %685 = vmatmul.mubr.f32.gmra.mrb[0].mxu0 %v684
        %v686 = vpop.f32.mrb[0].mxu0
        %v687 = vadd.f32 %v505, %v686
        %v688 = vpop.f32.mrb[0].mxu0
        %689 = vmatprep.mubr.f32.mxu0 0.0
        %v690 = vand.u32 %v311, 4294901760
        %691 = vmatmul.mubr.f32.gmra.mrb[0].mxu0 %v690
        %v692 = vpop.f32.mrb[0].mxu0
        %v693 = vadd.f32 %v515, %v692
        %v694 = vpop.f32.mrb[0].mxu0
        %695 = vmatprep.mubr.f32.mxu0 0.0
        %v696 = vand.u32 %v314, 4294901760
        %697 = vmatmul.mubr.f32.gmra.mrb[0].mxu0 %v696
        %v698 = vpop.f32.mrb[0].mxu0
        %v699 = vadd.f32 %v525, %v698
        %v700 = vpop.f32.mrb[0].mxu0
        %701 = vmatprep.mubr.f32.mxu0 0.0
        %v702 = vand.u32 %v317, 4294901760
        %703 = vmatmul.mubr.f32.gmra.mrb[0].mxu0 %v702
        %v704 = vpop.f32.mrb[0].mxu0
        %v705 = vadd.f32 %v535, %v704
        %v706 = vpop.f32.mrb[0].mxu0
        %707 = vmatprep.mubr.f32.mxu0 0.0
        %v708 = vand.u32 %v320, 4294901760
        %709 = vmatmul.mubr.f32.gmra.mrb[0].mxu0 %v708
        %v710 = vpop.f32.mrb[0].mxu0
        %v711 = vadd.f32 %v545, %v710
        %v712 = vpop.f32.mrb[0].mxu0
        %713 = vdwg.mxu0
        %714 = vmatprep.subr.mxu0 0.0
        %v715 = vand.u32 %v240, 4294901760
        %v716 = vsub.f32 %v240, %v715
        %717 = vmatpush1.msra.mxu0 %v716
        %718 = vmatprep.subr.mxu0 0.0
        %719 = vmatpush1.msra.mxu0 0.0
        %720 = vmatprep.subr.mxu0 0.0
        %721 = vmatpush1.msra.mxu0 0.0
        %722 = vmatprep.subr.mxu0 0.0
        %723 = vmatpush1.msra.mxu0 0.0
        %724 = vmatprep.subr.mxu0 0.0
        %725 = vmatpush1.msra.mxu0 0.0
        %726 = vmatprep.subr.mxu0 0.0
        %727 = vmatpush1.msra.mxu0 0.0
        %728 = vmatprep.subr.mxu0 0.0
        %729 = vmatpush1.msra.mxu0 0.0
        %730 = vmatprep.subr.mxu0 0.0
        %731 = vmatpush1.msra.mxu0 0.0
        %732 = vmatprep.subr.mxu0 0.0
        %733 = vmatpush1.msra.mxu0 0.0
        %734 = vmatprep.subr.mxu0 0.0
        %735 = vmatpush1.msra.mxu0 0.0
        %736 = vmatprep.subr.mxu0 0.0
        %737 = vmatpush1.msra.mxu0 0.0
        %738 = vmatprep.subr.mxu0 0.0
        %739 = vmatpush1.msra.mxu0 0.0
        %740 = vmatprep.subr.mxu0 0.0
        %741 = vmatpush1.msra.mxu0 0.0
        %742 = vmatprep.subr.mxu0 0.0
        %743 = vmatpush1.msra.mxu0 0.0
        %744 = vmatprep.subr.mxu0 0.0
        %745 = vmatpush1.msra.mxu0 0.0
        %746 = vmatprep.subr.mxu0 0.0
        %747 = vmatpush1.msra.mxu0 0.0
        %748 = vmatprep.subr.mxu0 0.0
        %749 = vmatpush1.msra.mxu0 0.0
        %750 = vmatprep.subr.mxu0 0.0
        %751 = vmatpush1.msra.mxu0 0.0
        %752 = vmatprep.subr.mxu0 0.0
        %753 = vmatpush1.msra.mxu0 0.0
        %754 = vmatprep.subr.mxu0 0.0
        %755 = vmatpush1.msra.mxu0 0.0
        %756 = vmatprep.subr.mxu0 0.0
        %757 = vmatpush1.msra.mxu0 0.0
        %758 = vmatprep.subr.mxu0 0.0
        %759 = vmatpush1.msra.mxu0 0.0
        %760 = vmatprep.subr.mxu0 0.0
        %761 = vmatpush1.msra.mxu0 0.0
        %762 = vmatprep.subr.mxu0 0.0
        %763 = vmatpush1.msra.mxu0 0.0
        %764 = vmatprep.subr.mxu0 0.0
        %765 = vmatpush1.msra.mxu0 0.0
        %766 = vmatprep.subr.mxu0 0.0
        %767 = vmatpush1.msra.mxu0 0.0
        %768 = vmatprep.subr.mxu0 0.0
        %769 = vmatpush1.msra.mxu0 0.0
        %770 = vmatprep.subr.mxu0 0.0
        %771 = vmatpush1.msra.mxu0 0.0
        %772 = vmatprep.subr.mxu0 0.0
        %773 = vmatpush1.msra.mxu0 0.0
        %774 = vmatprep.subr.mxu0 0.0
        %775 = vmatpush1.msra.mxu0 0.0
        %776 = vmatprep.subr.mxu0 0.0
        %777 = vmatpush1.msra.mxu0 0.0
        %778 = vmatprep.subr.mxu0 0.0
        %779 = vmatpush1.msra.mxu0 0.0
        %780 = vmatprep.mubr.f32.mxu0 0.0
        %v781 = vand.u32 %v275, 4294901760
        %v782 = vsub.f32 %v275, %v781
        %783 = vmatmul.mubr.f32.gmra.mrb[0].mxu0 %v782
        %v784 = vpop.f32.mrb[0].mxu0
        %v785 = vadd.f32 %v621, %v784
        %v786 = vpop.f32.mrb[0].mxu0
        %787 = vmatprep.mubr.f32.mxu0 0.0
        %v788 = vand.u32 %v278, 4294901760
        %v789 = vsub.f32 %v278, %v788
        %790 = vmatmul.mubr.f32.gmra.mrb[0].mxu0 %v789
        %v791 = vpop.f32.mrb[0].mxu0
        %v792 = vadd.f32 %v627, %v791
        %v793 = vpop.f32.mrb[0].mxu0
        %794 = vmatprep.mubr.f32.mxu0 0.0
        %v795 = vand.u32 %v281, 4294901760
        %v796 = vsub.f32 %v281, %v795
        %797 = vmatmul.mubr.f32.gmra.mrb[0].mxu0 %v796
        %v798 = vpop.f32.mrb[0].mxu0
        %v799 = vadd.f32 %v633, %v798
        %v800 = vpop.f32.mrb[0].mxu0
        %801 = vmatprep.mubr.f32.mxu0 0.0
        %v802 = vand.u32 %v284, 4294901760
        %v803 = vsub.f32 %v284, %v802
        %804 = vmatmul.mubr.f32.gmra.mrb[0].mxu0 %v803
        %v805 = vpop.f32.mrb[0].mxu0
        %v806 = vadd.f32 %v639, %v805
        %v807 = vpop.f32.mrb[0].mxu0
        %808 = vmatprep.mubr.f32.mxu0 0.0
        %v809 = vand.u32 %v287, 4294901760
        %v810 = vsub.f32 %v287, %v809
        %811 = vmatmul.mubr.f32.gmra.mrb[0].mxu0 %v810
        %v812 = vpop.f32.mrb[0].mxu0
        %v813 = vadd.f32 %v645, %v812
        %v814 = vpop.f32.mrb[0].mxu0
        %815 = vmatprep.mubr.f32.mxu0 0.0
        %v816 = vand.u32 %v290, 4294901760
        %v817 = vsub.f32 %v290, %v816
        %818 = vmatmul.mubr.f32.gmra.mrb[0].mxu0 %v817
        %v819 = vpop.f32.mrb[0].mxu0
        %v820 = vadd.f32 %v651, %v819
        %v821 = vpop.f32.mrb[0].mxu0
        %822 = vmatprep.mubr.f32.mxu0 0.0
        %v823 = vand.u32 %v293, 4294901760
        %v824 = vsub.f32 %v293, %v823
        %825 = vmatmul.mubr.f32.gmra.mrb[0].mxu0 %v824
        %v826 = vpop.f32.mrb[0].mxu0
        %v827 = vadd.f32 %v657, %v826
        %v828 = vpop.f32.mrb[0].mxu0
        %829 = vmatprep.mubr.f32.mxu0 0.0
        %v830 = vand.u32 %v296, 4294901760
        %v831 = vsub.f32 %v296, %v830
        %832 = vmatmul.mubr.f32.gmra.mrb[0].mxu0 %v831
        %v833 = vpop.f32.mrb[0].mxu0
        %v834 = vadd.f32 %v663, %v833
        %v835 = vpop.f32.mrb[0].mxu0
        %836 = vmatprep.mubr.f32.mxu0 0.0
        %v837 = vand.u32 %v299, 4294901760
        %v838 = vsub.f32 %v299, %v837
        %839 = vmatmul.mubr.f32.gmra.mrb[0].mxu0 %v838
        %v840 = vpop.f32.mrb[0].mxu0
        %v841 = vadd.f32 %v669, %v840
        %v842 = vpop.f32.mrb[0].mxu0
        %843 = vmatprep.mubr.f32.mxu0 0.0
        %v844 = vand.u32 %v302, 4294901760
        %v845 = vsub.f32 %v302, %v844
        %846 = vmatmul.mubr.f32.gmra.mrb[0].mxu0 %v845
        %v847 = vpop.f32.mrb[0].mxu0
        %v848 = vadd.f32 %v675, %v847
        %v849 = vpop.f32.mrb[0].mxu0
        %850 = vmatprep.mubr.f32.mxu0 0.0
        %v851 = vand.u32 %v305, 4294901760
        %v852 = vsub.f32 %v305, %v851
        %853 = vmatmul.mubr.f32.gmra.mrb[0].mxu0 %v852
        %v854 = vpop.f32.mrb[0].mxu0
        %v855 = vadd.f32 %v681, %v854
        %v856 = vpop.f32.mrb[0].mxu0
        %857 = vmatprep.mubr.f32.mxu0 0.0
        %v858 = vand.u32 %v308, 4294901760
        %v859 = vsub.f32 %v308, %v858
        %860 = vmatmul.mubr.f32.gmra.mrb[0].mxu0 %v859
        %v861 = vpop.f32.mrb[0].mxu0
        %v862 = vadd.f32 %v687, %v861
        %v863 = vpop.f32.mrb[0].mxu0
        %864 = vmatprep.mubr.f32.mxu0 0.0
        %v865 = vand.u32 %v311, 4294901760
        %v866 = vsub.f32 %v311, %v865
        %867 = vmatmul.mubr.f32.gmra.mrb[0].mxu0 %v866
        %v868 = vpop.f32.mrb[0].mxu0
        %v869 = vadd.f32 %v693, %v868
        %v870 = vpop.f32.mrb[0].mxu0
        %871 = vmatprep.mubr.f32.mxu0 0.0
        %v872 = vand.u32 %v314, 4294901760
        %v873 = vsub.f32 %v314, %v872
        %874 = vmatmul.mubr.f32.gmra.mrb[0].mxu0 %v873
        %v875 = vpop.f32.mrb[0].mxu0
        %v876 = vadd.f32 %v699, %v875
        %v877 = vpop.f32.mrb[0].mxu0
        %878 = vmatprep.mubr.f32.mxu0 0.0
        %v879 = vand.u32 %v317, 4294901760
        %v880 = vsub.f32 %v317, %v879
        %881 = vmatmul.mubr.f32.gmra.mrb[0].mxu0 %v880
        %v882 = vpop.f32.mrb[0].mxu0
        %v883 = vadd.f32 %v705, %v882
        %v884 = vpop.f32.mrb[0].mxu0
        %885 = vmatprep.mubr.f32.mxu0 0.0
        %v886 = vand.u32 %v320, 4294901760
        %v887 = vsub.f32 %v320, %v886
        %888 = vmatmul.mubr.f32.gmra.mrb[0].mxu0 %v887
        %v889 = vpop.f32.mrb[0].mxu0
        %v890 = vadd.f32 %v711, %v889
        %v891 = vpop.f32.mrb[0].mxu0
        %892 = vdwg.mxu0
        %893 = vmatprep.subr.mxu0 0.0
        %v894 = vand.u32 %v240, 4294901760
        %895 = vmatpush1.msra.mxu0 %v894
        %896 = vmatprep.subr.mxu0 0.0
        %897 = vmatpush1.msra.mxu0 0.0
        %898 = vmatprep.subr.mxu0 0.0
        %899 = vmatpush1.msra.mxu0 0.0
        %900 = vmatprep.subr.mxu0 0.0
        %901 = vmatpush1.msra.mxu0 0.0
        %902 = vmatprep.subr.mxu0 0.0
        %903 = vmatpush1.msra.mxu0 0.0
        %904 = vmatprep.subr.mxu0 0.0
        %905 = vmatpush1.msra.mxu0 0.0
        %906 = vmatprep.subr.mxu0 0.0
        %907 = vmatpush1.msra.mxu0 0.0
        %908 = vmatprep.subr.mxu0 0.0
        %909 = vmatpush1.msra.mxu0 0.0
        %910 = vmatprep.subr.mxu0 0.0
        %911 = vmatpush1.msra.mxu0 0.0
        %912 = vmatprep.subr.mxu0 0.0
        %913 = vmatpush1.msra.mxu0 0.0
        %914 = vmatprep.subr.mxu0 0.0
        %915 = vmatpush1.msra.mxu0 0.0
        %916 = vmatprep.subr.mxu0 0.0
        %917 = vmatpush1.msra.mxu0 0.0
        %918 = vmatprep.subr.mxu0 0.0
        %919 = vmatpush1.msra.mxu0 0.0
        %920 = vmatprep.subr.mxu0 0.0
        %921 = vmatpush1.msra.mxu0 0.0
        %922 = vmatprep.subr.mxu0 0.0
        %923 = vmatpush1.msra.mxu0 0.0
        %924 = vmatprep.subr.mxu0 0.0
        %925 = vmatpush1.msra.mxu0 0.0
        %926 = vmatprep.subr.mxu0 0.0
        %927 = vmatpush1.msra.mxu0 0.0
        %928 = vmatprep.subr.mxu0 0.0
        %929 = vmatpush1.msra.mxu0 0.0
        %930 = vmatprep.subr.mxu0 0.0
        %931 = vmatpush1.msra.mxu0 0.0
        %932 = vmatprep.subr.mxu0 0.0
        %933 = vmatpush1.msra.mxu0 0.0
        %934 = vmatprep.subr.mxu0 0.0
        %935 = vmatpush1.msra.mxu0 0.0
        %936 = vmatprep.subr.mxu0 0.0
        %937 = vmatpush1.msra.mxu0 0.0
        %938 = vmatprep.subr.mxu0 0.0
        %939 = vmatpush1.msra.mxu0 0.0
        %940 = vmatprep.subr.mxu0 0.0
        %941 = vmatpush1.msra.mxu0 0.0
        %942 = vmatprep.subr.mxu0 0.0
        %943 = vmatpush1.msra.mxu0 0.0
        %944 = vmatprep.subr.mxu0 0.0
        %945 = vmatpush1.msra.mxu0 0.0
        %946 = vmatprep.subr.mxu0 0.0
        %947 = vmatpush1.msra.mxu0 0.0
        %948 = vmatprep.subr.mxu0 0.0
        %949 = vmatpush1.msra.mxu0 0.0
        %950 = vmatprep.subr.mxu0 0.0
        %951 = vmatpush1.msra.mxu0 0.0
        %952 = vmatprep.subr.mxu0 0.0
        %953 = vmatpush1.msra.mxu0 0.0
        %954 = vmatprep.subr.mxu0 0.0
        %955 = vmatpush1.msra.mxu0 0.0
        %956 = vmatprep.subr.mxu0 0.0
        %957 = vmatpush1.msra.mxu0 0.0
        %958 = vmatprep.mubr.f32.mxu0 0.0
        %v959 = vand.u32 %v275, 4294901760
        %v960 = vsub.f32 %v275, %v959
        %v961 = vand.u32 %v960, 4294901760
        %962 = vmatmul.mubr.f32.gmra.mrb[0].mxu0 %v961
        %v963 = vpop.f32.mrb[0].mxu0
        %v964 = vadd.f32 %v785, %v963
        %v965 = vpop.f32.mrb[0].mxu0
        %966 = vmatprep.mubr.f32.mxu0 0.0
        %v967 = vand.u32 %v278, 4294901760
        %v968 = vsub.f32 %v278, %v967
        %v969 = vand.u32 %v968, 4294901760
        %970 = vmatmul.mubr.f32.gmra.mrb[0].mxu0 %v969
        %v971 = vpop.f32.mrb[0].mxu0
        %v972 = vadd.f32 %v792, %v971
        %v973 = vpop.f32.mrb[0].mxu0
        %974 = vmatprep.mubr.f32.mxu0 0.0
        %v975 = vand.u32 %v281, 4294901760
        %v976 = vsub.f32 %v281, %v975
        %v977 = vand.u32 %v976, 4294901760
        %978 = vmatmul.mubr.f32.gmra.mrb[0].mxu0 %v977
        %v979 = vpop.f32.mrb[0].mxu0
        %v980 = vadd.f32 %v799, %v979
        %v981 = vpop.f32.mrb[0].mxu0
        %982 = vmatprep.mubr.f32.mxu0 0.0
        %v983 = vand.u32 %v284, 4294901760
        %v984 = vsub.f32 %v284, %v983
        %v985 = vand.u32 %v984, 4294901760
        %986 = vmatmul.mubr.f32.gmra.mrb[0].mxu0 %v985
        %v987 = vpop.f32.mrb[0].mxu0
        %v988 = vadd.f32 %v806, %v987
        %v989 = vpop.f32.mrb[0].mxu0
        %990 = vmatprep.mubr.f32.mxu0 0.0
        %v991 = vand.u32 %v287, 4294901760
        %v992 = vsub.f32 %v287, %v991
        %v993 = vand.u32 %v992, 4294901760
        %994 = vmatmul.mubr.f32.gmra.mrb[0].mxu0 %v993
        %v995 = vpop.f32.mrb[0].mxu0
        %v996 = vadd.f32 %v813, %v995
        %v997 = vpop.f32.mrb[0].mxu0
        %998 = vmatprep.mubr.f32.mxu0 0.0
        %v999 = vand.u32 %v290, 4294901760
        %v1000 = vsub.f32 %v290, %v999
        %v1001 = vand.u32 %v1000, 4294901760
        %1002 = vmatmul.mubr.f32.gmra.mrb[0].mxu0 %v1001
        %v1003 = vpop.f32.mrb[0].mxu0
        %v1004 = vadd.f32 %v820, %v1003
        %v1005 = vpop.f32.mrb[0].mxu0
        %1006 = vmatprep.mubr.f32.mxu0 0.0
        %v1007 = vand.u32 %v293, 4294901760
        %v1008 = vsub.f32 %v293, %v1007
        %v1009 = vand.u32 %v1008, 4294901760
        %1010 = vmatmul.mubr.f32.gmra.mrb[0].mxu0 %v1009
        %v1011 = vpop.f32.mrb[0].mxu0
        %v1012 = vadd.f32 %v827, %v1011
        %v1013 = vpop.f32.mrb[0].mxu0
        %1014 = vmatprep.mubr.f32.mxu0 0.0
        %v1015 = vand.u32 %v296, 4294901760
        %v1016 = vsub.f32 %v296, %v1015
        %v1017 = vand.u32 %v1016, 4294901760
        %1018 = vmatmul.mubr.f32.gmra.mrb[0].mxu0 %v1017
        %v1019 = vpop.f32.mrb[0].mxu0
        %v1020 = vadd.f32 %v834, %v1019
        %v1021 = vpop.f32.mrb[0].mxu0
        %1022 = vmatprep.mubr.f32.mxu0 0.0
        %v1023 = vand.u32 %v299, 4294901760
        %v1024 = vsub.f32 %v299, %v1023
        %v1025 = vand.u32 %v1024, 4294901760
        %1026 = vmatmul.mubr.f32.gmra.mrb[0].mxu0 %v1025
        %v1027 = vpop.f32.mrb[0].mxu0
        %v1028 = vadd.f32 %v841, %v1027
        %v1029 = vpop.f32.mrb[0].mxu0
        %1030 = vmatprep.mubr.f32.mxu0 0.0
        %v1031 = vand.u32 %v302, 4294901760
        %v1032 = vsub.f32 %v302, %v1031
        %v1033 = vand.u32 %v1032, 4294901760
        %1034 = vmatmul.mubr.f32.gmra.mrb[0].mxu0 %v1033
        %v1035 = vpop.f32.mrb[0].mxu0
        %v1036 = vadd.f32 %v848, %v1035
        %v1037 = vpop.f32.mrb[0].mxu0
        %1038 = vmatprep.mubr.f32.mxu0 0.0
        %v1039 = vand.u32 %v305, 4294901760
        %v1040 = vsub.f32 %v305, %v1039
        %v1041 = vand.u32 %v1040, 4294901760
        %1042 = vmatmul.mubr.f32.gmra.mrb[0].mxu0 %v1041
        %v1043 = vpop.f32.mrb[0].mxu0
        %v1044 = vadd.f32 %v855, %v1043
        %v1045 = vpop.f32.mrb[0].mxu0
        %1046 = vmatprep.mubr.f32.mxu0 0.0
        %v1047 = vand.u32 %v308, 4294901760
        %v1048 = vsub.f32 %v308, %v1047
        %v1049 = vand.u32 %v1048, 4294901760
        %1050 = vmatmul.mubr.f32.gmra.mrb[0].mxu0 %v1049
        %v1051 = vpop.f32.mrb[0].mxu0
        %v1052 = vadd.f32 %v862, %v1051
        %v1053 = vpop.f32.mrb[0].mxu0
        %1054 = vmatprep.mubr.f32.mxu0 0.0
        %v1055 = vand.u32 %v311, 4294901760
        %v1056 = vsub.f32 %v311, %v1055
        %v1057 = vand.u32 %v1056, 4294901760
        %1058 = vmatmul.mubr.f32.gmra.mrb[0].mxu0 %v1057
        %v1059 = vpop.f32.mrb[0].mxu0
        %v1060 = vadd.f32 %v869, %v1059
        %v1061 = vpop.f32.mrb[0].mxu0
        %1062 = vmatprep.mubr.f32.mxu0 0.0
        %v1063 = vand.u32 %v314, 4294901760
        %v1064 = vsub.f32 %v314, %v1063
        %v1065 = vand.u32 %v1064, 4294901760
        %1066 = vmatmul.mubr.f32.gmra.mrb[0].mxu0 %v1065
        %v1067 = vpop.f32.mrb[0].mxu0
        %v1068 = vadd.f32 %v876, %v1067
        %v1069 = vpop.f32.mrb[0].mxu0
        %1070 = vmatprep.mubr.f32.mxu0 0.0
        %v1071 = vand.u32 %v317, 4294901760
        %v1072 = vsub.f32 %v317, %v1071
        %v1073 = vand.u32 %v1072, 4294901760
        %1074 = vmatmul.mubr.f32.gmra.mrb[0].mxu0 %v1073
        %v1075 = vpop.f32.mrb[0].mxu0
        %v1076 = vadd.f32 %v883, %v1075
        %v1077 = vpop.f32.mrb[0].mxu0
        %1078 = vmatprep.mubr.f32.mxu0 0.0
        %v1079 = vand.u32 %v320, 4294901760
        %v1080 = vsub.f32 %v320, %v1079
        %v1081 = vand.u32 %v1080, 4294901760
        %1082 = vmatmul.mubr.f32.gmra.mrb[0].mxu0 %v1081
        %v1083 = vpop.f32.mrb[0].mxu0
        %v1084 = vadd.f32 %v890, %v1083
        %v1085 = vpop.f32.mrb[0].mxu0
        %1086 = vdwg.mxu0
        %1087 = vmatprep.subr.mxu0 0.0
        %v1088 = vand.u32 %v240, 4294901760
        %v1089 = vsub.f32 %v240, %v1088
        %v1090 = vand.u32 %v1089, 4294901760
        %1091 = vmatpush1.msra.mxu0 %v1090
        %1092 = vmatprep.subr.mxu0 0.0
        %1093 = vmatpush1.msra.mxu0 0.0
        %1094 = vmatprep.subr.mxu0 0.0
        %1095 = vmatpush1.msra.mxu0 0.0
        %1096 = vmatprep.subr.mxu0 0.0
        %1097 = vmatpush1.msra.mxu0 0.0
        %1098 = vmatprep.subr.mxu0 0.0
        %1099 = vmatpush1.msra.mxu0 0.0
        %1100 = vmatprep.subr.mxu0 0.0
        %1101 = vmatpush1.msra.mxu0 0.0
        %1102 = vmatprep.subr.mxu0 0.0
        %1103 = vmatpush1.msra.mxu0 0.0
        %1104 = vmatprep.subr.mxu0 0.0
        %1105 = vmatpush1.msra.mxu0 0.0
        %1106 = vmatprep.subr.mxu0 0.0
        %1107 = vmatpush1.msra.mxu0 0.0
        %1108 = vmatprep.subr.mxu0 0.0
        %1109 = vmatpush1.msra.mxu0 0.0
        %1110 = vmatprep.subr.mxu0 0.0
        %1111 = vmatpush1.msra.mxu0 0.0
        %1112 = vmatprep.subr.mxu0 0.0
        %1113 = vmatpush1.msra.mxu0 0.0
        %1114 = vmatprep.subr.mxu0 0.0
        %1115 = vmatpush1.msra.mxu0 0.0
        %1116 = vmatprep.subr.mxu0 0.0
        %1117 = vmatpush1.msra.mxu0 0.0
        %1118 = vmatprep.subr.mxu0 0.0
        %1119 = vmatpush1.msra.mxu0 0.0
        %1120 = vmatprep.subr.mxu0 0.0
        %1121 = vmatpush1.msra.mxu0 0.0
        %1122 = vmatprep.subr.mxu0 0.0
        %1123 = vmatpush1.msra.mxu0 0.0
        %1124 = vmatprep.subr.mxu0 0.0
        %1125 = vmatpush1.msra.mxu0 0.0
        %1126 = vmatprep.subr.mxu0 0.0
        %1127 = vmatpush1.msra.mxu0 0.0
        %1128 = vmatprep.subr.mxu0 0.0
        %1129 = vmatpush1.msra.mxu0 0.0
        %1130 = vmatprep.subr.mxu0 0.0
        %1131 = vmatpush1.msra.mxu0 0.0
        %1132 = vmatprep.subr.mxu0 0.0
        %1133 = vmatpush1.msra.mxu0 0.0
        %1134 = vmatprep.subr.mxu0 0.0
        %1135 = vmatpush1.msra.mxu0 0.0
        %1136 = vmatprep.subr.mxu0 0.0
        %1137 = vmatpush1.msra.mxu0 0.0
        %1138 = vmatprep.subr.mxu0 0.0
        %1139 = vmatpush1.msra.mxu0 0.0
        %1140 = vmatprep.subr.mxu0 0.0
        %1141 = vmatpush1.msra.mxu0 0.0
        %1142 = vmatprep.subr.mxu0 0.0
        %1143 = vmatpush1.msra.mxu0 0.0
        %1144 = vmatprep.subr.mxu0 0.0
        %1145 = vmatpush1.msra.mxu0 0.0
        %1146 = vmatprep.subr.mxu0 0.0
        %1147 = vmatpush1.msra.mxu0 0.0
        %1148 = vmatprep.subr.mxu0 0.0
        %1149 = vmatpush1.msra.mxu0 0.0
        %1150 = vmatprep.subr.mxu0 0.0
        %1151 = vmatpush1.msra.mxu0 0.0
        %1152 = vmatprep.subr.mxu0 0.0
        %1153 = vmatpush1.msra.mxu0 0.0
        %1154 = vmatprep.mubr.f32.mxu0 0.0
        %v1155 = vand.u32 %v275, 4294901760
        %1156 = vmatmul.mubr.f32.gmra.mrb[0].mxu0 %v1155
        %v1157 = vpop.f32.mrb[0].mxu0
        %v1158 = vadd.f32 %v964, %v1157
        %v1159 = vpop.f32.mrb[0].mxu0
        %1160 = vmatprep.mubr.f32.mxu0 0.0
        %v1161 = vand.u32 %v278, 4294901760
        %1162 = vmatmul.mubr.f32.gmra.mrb[0].mxu0 %v1161
        %v1163 = vpop.f32.mrb[0].mxu0
        %v1164 = vadd.f32 %v972, %v1163
        %v1165 = vpop.f32.mrb[0].mxu0
        %1166 = vmatprep.mubr.f32.mxu0 0.0
        %v1167 = vand.u32 %v281, 4294901760
        %1168 = vmatmul.mubr.f32.gmra.mrb[0].mxu0 %v1167
        %v1169 = vpop.f32.mrb[0].mxu0
        %v1170 = vadd.f32 %v980, %v1169
        %v1171 = vpop.f32.mrb[0].mxu0
        %1172 = vmatprep.mubr.f32.mxu0 0.0
        %v1173 = vand.u32 %v284, 4294901760
        %1174 = vmatmul.mubr.f32.gmra.mrb[0].mxu0 %v1173
        %v1175 = vpop.f32.mrb[0].mxu0
        %v1176 = vadd.f32 %v988, %v1175
        %v1177 = vpop.f32.mrb[0].mxu0
        %1178 = vmatprep.mubr.f32.mxu0 0.0
        %v1179 = vand.u32 %v287, 4294901760
        %1180 = vmatmul.mubr.f32.gmra.mrb[0].mxu0 %v1179
        %v1181 = vpop.f32.mrb[0].mxu0
        %v1182 = vadd.f32 %v996, %v1181
        %v1183 = vpop.f32.mrb[0].mxu0
        %1184 = vmatprep.mubr.f32.mxu0 0.0
        %v1185 = vand.u32 %v290, 4294901760
        %1186 = vmatmul.mubr.f32.gmra.mrb[0].mxu0 %v1185
        %v1187 = vpop.f32.mrb[0].mxu0
        %v1188 = vadd.f32 %v1004, %v1187
        %v1189 = vpop.f32.mrb[0].mxu0
        %1190 = vmatprep.mubr.f32.mxu0 0.0
        %v1191 = vand.u32 %v293, 4294901760
        %1192 = vmatmul.mubr.f32.gmra.mrb[0].mxu0 %v1191
        %v1193 = vpop.f32.mrb[0].mxu0
        %v1194 = vadd.f32 %v1012, %v1193
        %v1195 = vpop.f32.mrb[0].mxu0
        %1196 = vmatprep.mubr.f32.mxu0 0.0
        %v1197 = vand.u32 %v296, 4294901760
        %1198 = vmatmul.mubr.f32.gmra.mrb[0].mxu0 %v1197
        %v1199 = vpop.f32.mrb[0].mxu0
        %v1200 = vadd.f32 %v1020, %v1199
        %v1201 = vpop.f32.mrb[0].mxu0
        %1202 = vmatprep.mubr.f32.mxu0 0.0
        %v1203 = vand.u32 %v299, 4294901760
        %1204 = vmatmul.mubr.f32.gmra.mrb[0].mxu0 %v1203
        %v1205 = vpop.f32.mrb[0].mxu0
        %v1206 = vadd.f32 %v1028, %v1205
        %v1207 = vpop.f32.mrb[0].mxu0
        %1208 = vmatprep.mubr.f32.mxu0 0.0
        %v1209 = vand.u32 %v302, 4294901760
        %1210 = vmatmul.mubr.f32.gmra.mrb[0].mxu0 %v1209
        %v1211 = vpop.f32.mrb[0].mxu0
        %v1212 = vadd.f32 %v1036, %v1211
        %v1213 = vpop.f32.mrb[0].mxu0
        %1214 = vmatprep.mubr.f32.mxu0 0.0
        %v1215 = vand.u32 %v305, 4294901760
        %1216 = vmatmul.mubr.f32.gmra.mrb[0].mxu0 %v1215
        %v1217 = vpop.f32.mrb[0].mxu0
        %v1218 = vadd.f32 %v1044, %v1217
        %v1219 = vpop.f32.mrb[0].mxu0
        %1220 = vmatprep.mubr.f32.mxu0 0.0
        %v1221 = vand.u32 %v308, 4294901760
        %1222 = vmatmul.mubr.f32.gmra.mrb[0].mxu0 %v1221
        %v1223 = vpop.f32.mrb[0].mxu0
        %v1224 = vadd.f32 %v1052, %v1223
        %v1225 = vpop.f32.mrb[0].mxu0
        %1226 = vmatprep.mubr.f32.mxu0 0.0
        %v1227 = vand.u32 %v311, 4294901760
        %1228 = vmatmul.mubr.f32.gmra.mrb[0].mxu0 %v1227
        %v1229 = vpop.f32.mrb[0].mxu0
        %v1230 = vadd.f32 %v1060, %v1229
        %v1231 = vpop.f32.mrb[0].mxu0
        %1232 = vmatprep.mubr.f32.mxu0 0.0
        %v1233 = vand.u32 %v314, 4294901760
        %1234 = vmatmul.mubr.f32.gmra.mrb[0].mxu0 %v1233
        %v1235 = vpop.f32.mrb[0].mxu0
        %v1236 = vadd.f32 %v1068, %v1235
        %v1237 = vpop.f32.mrb[0].mxu0
        %1238 = vmatprep.mubr.f32.mxu0 0.0
        %v1239 = vand.u32 %v317, 4294901760
        %1240 = vmatmul.mubr.f32.gmra.mrb[0].mxu0 %v1239
        %v1241 = vpop.f32.mrb[0].mxu0
        %v1242 = vadd.f32 %v1076, %v1241
        %v1243 = vpop.f32.mrb[0].mxu0
        %1244 = vmatprep.mubr.f32.mxu0 0.0
        %v1245 = vand.u32 %v320, 4294901760
        %1246 = vmatmul.mubr.f32.gmra.mrb[0].mxu0 %v1245
        %v1247 = vpop.f32.mrb[0].mxu0
        %v1248 = vadd.f32 %v1084, %v1247
        %v1249 = vpop.f32.mrb[0].mxu0
        %1250 = vdwg.mxu0
        %1251 = vmatprep.subr.mxu0 0.0
        %v1252 = vand.u32 %v240, 4294901760
        %1253 = vmatpush1.msra.mxu0 %v1252
        %1254 = vmatprep.subr.mxu0 0.0
        %1255 = vmatpush1.msra.mxu0 0.0
        %1256 = vmatprep.subr.mxu0 0.0
        %1257 = vmatpush1.msra.mxu0 0.0
        %1258 = vmatprep.subr.mxu0 0.0
        %1259 = vmatpush1.msra.mxu0 0.0
        %1260 = vmatprep.subr.mxu0 0.0
        %1261 = vmatpush1.msra.mxu0 0.0
        %1262 = vmatprep.subr.mxu0 0.0
        %1263 = vmatpush1.msra.mxu0 0.0
        %1264 = vmatprep.subr.mxu0 0.0
        %1265 = vmatpush1.msra.mxu0 0.0
        %1266 = vmatprep.subr.mxu0 0.0
        %1267 = vmatpush1.msra.mxu0 0.0
        %1268 = vmatprep.subr.mxu0 0.0
        %1269 = vmatpush1.msra.mxu0 0.0
        %1270 = vmatprep.subr.mxu0 0.0
        %1271 = vmatpush1.msra.mxu0 0.0
        %1272 = vmatprep.subr.mxu0 0.0
        %1273 = vmatpush1.msra.mxu0 0.0
        %1274 = vmatprep.subr.mxu0 0.0
        %1275 = vmatpush1.msra.mxu0 0.0
        %1276 = vmatprep.subr.mxu0 0.0
        %1277 = vmatpush1.msra.mxu0 0.0
        %1278 = vmatprep.subr.mxu0 0.0
        %1279 = vmatpush1.msra.mxu0 0.0
        %1280 = vmatprep.subr.mxu0 0.0
        %1281 = vmatpush1.msra.mxu0 0.0
        %1282 = vmatprep.subr.mxu0 0.0
        %1283 = vmatpush1.msra.mxu0 0.0
        %1284 = vmatprep.subr.mxu0 0.0
        %1285 = vmatpush1.msra.mxu0 0.0
        %1286 = vmatprep.subr.mxu0 0.0
        %1287 = vmatpush1.msra.mxu0 0.0
        %1288 = vmatprep.subr.mxu0 0.0
        %1289 = vmatpush1.msra.mxu0 0.0
        %1290 = vmatprep.subr.mxu0 0.0
        %1291 = vmatpush1.msra.mxu0 0.0
        %1292 = vmatprep.subr.mxu0 0.0
        %1293 = vmatpush1.msra.mxu0 0.0
        %1294 = vmatprep.subr.mxu0 0.0
        %1295 = vmatpush1.msra.mxu0 0.0
        %1296 = vmatprep.subr.mxu0 0.0
        %1297 = vmatpush1.msra.mxu0 0.0
        %1298 = vmatprep.subr.mxu0 0.0
        %1299 = vmatpush1.msra.mxu0 0.0
        %1300 = vmatprep.subr.mxu0 0.0
        %1301 = vmatpush1.msra.mxu0 0.0
        %1302 = vmatprep.subr.mxu0 0.0
        %1303 = vmatpush1.msra.mxu0 0.0
        %1304 = vmatprep.subr.mxu0 0.0
        %1305 = vmatpush1.msra.mxu0 0.0
        %1306 = vmatprep.subr.mxu0 0.0
        %1307 = vmatpush1.msra.mxu0 0.0
        %1308 = vmatprep.subr.mxu0 0.0
        %1309 = vmatpush1.msra.mxu0 0.0
        %1310 = vmatprep.subr.mxu0 0.0
        %1311 = vmatpush1.msra.mxu0 0.0
        %1312 = vmatprep.subr.mxu0 0.0
        %1313 = vmatpush1.msra.mxu0 0.0
        %1314 = vmatprep.subr.mxu0 0.0
        %1315 = vmatpush1.msra.mxu0 0.0
        %1316 = vmatprep.mubr.f32.mxu0 0.0
        %v1317 = vand.u32 %v275, 4294901760
        %1318 = vmatmul.mubr.f32.gmra.mrb[0].mxu0 %v1317
        %v1319 = vpop.f32.mrb[0].mxu0
        %v1320 = vadd.f32 %v1158, %v1319
        %v1321 = vpop.f32.mrb[0].mxu0
        %1322 = vmatprep.mubr.f32.mxu0 0.0
        %v1323 = vand.u32 %v278, 4294901760
        %1324 = vmatmul.mubr.f32.gmra.mrb[0].mxu0 %v1323
        %v1325 = vpop.f32.mrb[0].mxu0
        %v1326 = vadd.f32 %v1164, %v1325
        %v1327 = vpop.f32.mrb[0].mxu0
        %1328 = vmatprep.mubr.f32.mxu0 0.0
        %v1329 = vand.u32 %v281, 4294901760
        %1330 = vmatmul.mubr.f32.gmra.mrb[0].mxu0 %v1329
        %v1331 = vpop.f32.mrb[0].mxu0
        %v1332 = vadd.f32 %v1170, %v1331
        %v1333 = vpop.f32.mrb[0].mxu0
        %1334 = vmatprep.mubr.f32.mxu0 0.0
        %v1335 = vand.u32 %v284, 4294901760
        %1336 = vmatmul.mubr.f32.gmra.mrb[0].mxu0 %v1335
        %v1337 = vpop.f32.mrb[0].mxu0
        %v1338 = vadd.f32 %v1176, %v1337
        %v1339 = vpop.f32.mrb[0].mxu0
        %1340 = vmatprep.mubr.f32.mxu0 0.0
        %v1341 = vand.u32 %v287, 4294901760
        %1342 = vmatmul.mubr.f32.gmra.mrb[0].mxu0 %v1341
        %v1343 = vpop.f32.mrb[0].mxu0
        %v1344 = vadd.f32 %v1182, %v1343
        %v1345 = vpop.f32.mrb[0].mxu0
        %1346 = vmatprep.mubr.f32.mxu0 0.0
        %v1347 = vand.u32 %v290, 4294901760
        %1348 = vmatmul.mubr.f32.gmra.mrb[0].mxu0 %v1347
        %v1349 = vpop.f32.mrb[0].mxu0
        %v1350 = vadd.f32 %v1188, %v1349
        %v1351 = vpop.f32.mrb[0].mxu0
        %1352 = vmatprep.mubr.f32.mxu0 0.0
        %v1353 = vand.u32 %v293, 4294901760
        %1354 = vmatmul.mubr.f32.gmra.mrb[0].mxu0 %v1353
        %v1355 = vpop.f32.mrb[0].mxu0
        %v1356 = vadd.f32 %v1194, %v1355
        %v1357 = vpop.f32.mrb[0].mxu0
        %1358 = vmatprep.mubr.f32.mxu0 0.0
        %v1359 = vand.u32 %v296, 4294901760
        %1360 = vmatmul.mubr.f32.gmra.mrb[0].mxu0 %v1359
        %v1361 = vpop.f32.mrb[0].mxu0
        %v1362 = vadd.f32 %v1200, %v1361
        %v1363 = vpop.f32.mrb[0].mxu0
        %1364 = vmatprep.mubr.f32.mxu0 0.0
        %v1365 = vand.u32 %v299, 4294901760
        %1366 = vmatmul.mubr.f32.gmra.mrb[0].mxu0 %v1365
        %v1367 = vpop.f32.mrb[0].mxu0
        %v1368 = vadd.f32 %v1206, %v1367
        %v1369 = vpop.f32.mrb[0].mxu0
        %1370 = vmatprep.mubr.f32.mxu0 0.0
        %v1371 = vand.u32 %v302, 4294901760
        %1372 = vmatmul.mubr.f32.gmra.mrb[0].mxu0 %v1371
        %v1373 = vpop.f32.mrb[0].mxu0
        %v1374 = vadd.f32 %v1212, %v1373
        %v1375 = vpop.f32.mrb[0].mxu0
        %1376 = vmatprep.mubr.f32.mxu0 0.0
        %v1377 = vand.u32 %v305, 4294901760
        %1378 = vmatmul.mubr.f32.gmra.mrb[0].mxu0 %v1377
        %v1379 = vpop.f32.mrb[0].mxu0
        %v1380 = vadd.f32 %v1218, %v1379
        %v1381 = vpop.f32.mrb[0].mxu0
        %1382 = vmatprep.mubr.f32.mxu0 0.0
        %v1383 = vand.u32 %v308, 4294901760
        %1384 = vmatmul.mubr.f32.gmra.mrb[0].mxu0 %v1383
        %v1385 = vpop.f32.mrb[0].mxu0
        %v1386 = vadd.f32 %v1224, %v1385
        %v1387 = vpop.f32.mrb[0].mxu0
        %1388 = vmatprep.mubr.f32.mxu0 0.0
        %v1389 = vand.u32 %v311, 4294901760
        %1390 = vmatmul.mubr.f32.gmra.mrb[0].mxu0 %v1389
        %v1391 = vpop.f32.mrb[0].mxu0
        %v1392 = vadd.f32 %v1230, %v1391
        %v1393 = vpop.f32.mrb[0].mxu0
        %1394 = vmatprep.mubr.f32.mxu0 0.0
        %v1395 = vand.u32 %v314, 4294901760
        %1396 = vmatmul.mubr.f32.gmra.mrb[0].mxu0 %v1395
        %v1397 = vpop.f32.mrb[0].mxu0
        %v1398 = vadd.f32 %v1236, %v1397
        %v1399 = vpop.f32.mrb[0].mxu0
        %1400 = vmatprep.mubr.f32.mxu0 0.0
        %v1401 = vand.u32 %v317, 4294901760
        %1402 = vmatmul.mubr.f32.gmra.mrb[0].mxu0 %v1401
        %v1403 = vpop.f32.mrb[0].mxu0
        %v1404 = vadd.f32 %v1242, %v1403
        %v1405 = vpop.f32.mrb[0].mxu0
        %1406 = vmatprep.mubr.f32.mxu0 0.0
        %v1407 = vand.u32 %v320, 4294901760
        %1408 = vmatmul.mubr.f32.gmra.mrb[0].mxu0 %v1407
        %v1409 = vpop.f32.mrb[0].mxu0
        %v1410 = vadd.f32 %v1248, %v1409
        %v1411 = vpop.f32.mrb[0].mxu0
        %1412 = vdwg.mxu0
        %v1413 = vmul.f32 %v1320, %v1320
        %v1414 = vmul.f32 %v1326, %v1326
        %v1415 = vmul.f32 %v1332, %v1332
        %v1416 = vmul.f32 %v1338, %v1338
        %v1417 = vmul.f32 %v1344, %v1344
        %v1418 = vmul.f32 %v1350, %v1350
        %v1419 = vmul.f32 %v1356, %v1356
        %v1420 = vmul.f32 %v1362, %v1362
        %v1421 = vmul.f32 %v1368, %v1368
        %v1422 = vmul.f32 %v1374, %v1374
        %v1423 = vmul.f32 %v1380, %v1380
        %v1424 = vmul.f32 %v1386, %v1386
        %v1425 = vmul.f32 %v1392, %v1392
        %v1426 = vmul.f32 %v1398, %v1398
        %v1427 = vmul.f32 %v1404, %v1404
        %v1428 = vmul.f32 %v1410, %v1410
        %1429 = vst [vmem:[%s237] sm:$0xff] %v1413
        %1430 = vst [vmem:[%s237 + $0x8] sm:$0xff] %v1414
        %1431 = vst [vmem:[%s237 + $0x10] sm:$0xff] %v1415
        %1432 = vst [vmem:[%s237 + $0x18] sm:$0xff] %v1416
        %1433 = vst [vmem:[%s237 + $0x20] sm:$0xff] %v1417
        %1434 = vst [vmem:[%s237 + $0x28] sm:$0xff] %v1418
        %1435 = vst [vmem:[%s237 + $0x30] sm:$0xff] %v1419
        %1436 = vst [vmem:[%s237 + $0x38] sm:$0xff] %v1420
        %1437 = vst [vmem:[%s237 + $0x40] sm:$0xff] %v1421
        %1438 = vst [vmem:[%s237 + $0x48] sm:$0xff] %v1422
        %1439 = vst [vmem:[%s237 + $0x50] sm:$0xff] %v1423
        %1440 = vst [vmem:[%s237 + $0x58] sm:$0xff] %v1424
        %1441 = vst [vmem:[%s237 + $0x60] sm:$0xff] %v1425
        %1442 = vst [vmem:[%s237 + $0x68] sm:$0xff] %v1426
        %1443 = vst [vmem:[%s237 + $0x70] sm:$0xff] %v1427
        %1444 = vst [vmem:[%s237 + $0x78] sm:$0xff] %v1428
        %s1445 = sand.u32 %s119, 1
        %s1446 = scalar_lea.sflag [#allocation5], %s1445
        %s1447 = sand.u32 %s119, 1
        %s1448 = smul.addr %s1447, 128
        %s1449 = scalar_lea.vmem [#allocation8], %s1448
        // Predicated region
        $region41: #{tpu_custom_call.1} parent=31 // pred_check
          %p1450 = pneg %p129
        $region42: #{tpu_custom_call.1} parent=31 // pred_check_branch
          %1452 = sbr.rel (%p1450) target = $region44
        $region43: #{tpu_custom_call.1} parent=31 // pred_region
          %s1453 = smul.u32 16, %s28
          %s1455 = ssub.s32 2048, 2048
          %1456 = vsyncadd %s1446, %s1455
          %s1457 = smul.addr %s1453, 2
          %s1458 = sadd.s32 %s29, %s1457
          %s1459 = smul.addr %s1458, 128
          %s1460 = scalar_lea.hbm %s3, %s1459
          %s1461 = sshll.u32 %s1449, 4
          %s1462 = int_to_ptr.vmem [resolvable:$true] %s1461
          %1467 = dma.vmem_to_hbm [thread:$0]  %s1462, 2048, %s1460, %s1446, 128, 256, 8
        $region44: #{tpu_custom_call.1} parent=31 // pred_fallthru
          _
      $region32: #{tpu_custom_call.1} parent=5 // pred_fallthru
        _
      %p1468 = scmp.le.s32.totalorder 2, %s19
      // Predicated region
      $region45: #{tpu_custom_call.1} parent=5 // pred_check
        %p1469 = pneg %p1468
      $region46: #{tpu_custom_call.1} parent=5 // pred_check_branch
        %1471 = sbr.rel (%p1469) target = $region48
      $region47: #{tpu_custom_call.1} parent=5 // pred_region
        %s1472 = ssub.s32 %s19, 2
        // Predicated region
        $region49: #{tpu_custom_call.1} parent=47 // pred_check
          %p1473 = pneg %p135
        $region50: #{tpu_custom_call.1} parent=47 // pred_check_branch
          %1475 = sbr.rel (%p1473) target = $region52
        $region51: #{tpu_custom_call.1} parent=47 // pred_region
          %s1476 = sand.u32 %s120, 1
          %s1477 = scalar_lea.sflag [#allocation5], %s1476
          %s1478 = sand.u32 %s120, 1
          %s1479 = smul.addr %s1478, 128
          %s1480 = scalar_lea.vmem [#allocation8], %s1479
          %1481 = dma.done %s1477, 2048
        $region52: #{tpu_custom_call.1} parent=47 // pred_fallthru
          _
      $region48: #{tpu_custom_call.1} parent=5 // pred_fallthru
        _
    $region6: #{tpu_custom_call.1} parent=1 // loop_footer
      %s23 = sadd.s32 1, %s19
    $region7: #{tpu_custom_call.1} parent=1 // loop_footer_branch
      %18 = sbr.rel target = $region3
    $region8: #{tpu_custom_call.1} parent=1 // loop_exit
      _
    %1482 = vsyncpa [#allocation4], 1
    %s1483 = scalar_lea.sflag [#allocation4], 1
    %1484 = vsyncpa %s1483, 1
    %1485 = vsyncpa [#allocation7], 1
    %s1486 = scalar_lea.sflag [#allocation7], 1
    %1487 = vsyncpa %s1486, 1
    %1488 = vsyncpa [#allocation5], 1
    %s1489 = scalar_lea.sflag [#allocation5], 1
    %1490 = vsyncpa %s1489, 1

</llo_original>
